<compile_context>
chip_gen: v5e
topology: v5e:2x2
jax: 0.10.0
libtpu: 0.0.40
codegen_flags: <defaults>
</compile_context>

<pallas_src>
import jax
import jax.numpy as jnp
from jax.experimental import pallas as pl
from jax.experimental.pallas import tpu as pltpu

# ----------------------------- config --------------------------------------
B = 2            # batch
S = 1            # new decoder tokens this step (incremental decode)
P = 3            # cached self-attention length
E = 8            # encoder sequence length
D = 32           # d_model
H = 4            # attention heads
DK = 8           # d_kv per head (H * DK == D)
DFF = 64         # feed-forward dim
V = 128          # vocab size
L = 2            # decoder layers
EPS = 1e-6
NUM_BUCKETS = 32
MAX_DIST = 128

T_SELF = P + S   # grown self-attention length

# kernel argument bookkeeping
N_FIXED_IN = 5                 # emb, self_bias, enc_bias, seg, segT
N_CACHE_IN = 4 * L             # per layer: self_k, self_v, cross_k, cross_v
N_WEIGHT_IN = 11               # ln0, ln1, ln2, wqkv, wo0, wq1, wo1, wi, wo_ff, fln, lm_head
N_IN = N_FIXED_IN + N_CACHE_IN + N_WEIGHT_IN
N_OUT = 1 + 2 * L              # logits, per layer: k_out, v_out


# ----------------------------- fused Pallas kernel --------------------------

def _t5_decode_step_kernel(*refs):
    """One full incremental decode step (all L layers + LM head), fully in VMEM."""
    emb_ref, sbias_ref, ebias_ref, seg_ref, segT_ref = refs[0:N_FIXED_IN]
    cache_refs = refs[N_FIXED_IN:N_FIXED_IN + N_CACHE_IN]
    (ln0_ref, ln1_ref, ln2_ref, wqkv_ref, wo0_ref, wq1_ref, wo1_ref,
     wi_ref, woff_ref, fln_ref, lmhead_ref) = refs[N_FIXED_IN + N_CACHE_IN:N_IN]
    logits_ref = refs[N_IN]
    kv_out_refs = refs[N_IN + 1:N_IN + N_OUT]
    att_ref = refs[N_IN + N_OUT]          # VMEM (B, D) head-merge buffer

    seg = seg_ref[...]                    # (D, H) 0/1 head-segment indicator
    segT = segT_ref[...]                  # (H, D) its transpose

    def rms(x, w):
        var = jnp.mean(x * x, axis=-1, keepdims=True)
        return x * jax.lax.rsqrt(var + EPS) * w

    def mha(q_row, kv_k, kv_v, bias):
        # q_row: (1, D) head-concat query, kv_k/kv_v: (T, D) head-concat K/V,
        # bias: (T, H).  T5: no 1/sqrt(dk) scaling.
        # Per-head scores via the 0/1 segment matrix (block-diagonal trick):
        s = jnp.dot(q_row * kv_k, seg, preferred_element_type=jnp.float32) + bias  # (T, H)
        m = jnp.max(s, axis=0, keepdims=True)
        e = jnp.exp(s - m)
        denom = jnp.sum(e, axis=0, keepdims=True)
        p = e * pl.reciprocal(denom, approx=True)          # softmax over T (EUP slot)
        p_full = jnp.dot(p, segT, preferred_element_type=jnp.float32)              # (T, D)
        return jnp.sum(p_full * kv_v, axis=0, keepdims=True)                       # (1, D)

    hidden = emb_ref[...]                 # (B, D)

    for l in range(L):                    # static unroll over layers
        k_past_ref, v_past_ref, ck_ref, cv_ref = cache_refs[4 * l:4 * l + 4]
        k_out_ref, v_out_ref = kv_out_refs[2 * l:2 * l + 2]

        # ---------------- self-attention (grows the KV cache) ----------------
        normed = rms(hidden, ln0_ref[l])
        qkv = jnp.dot(normed, wqkv_ref[l],
                      preferred_element_type=jnp.float32)            # (B, 3D)

        # present K/V: bulk-copy the past slab once, then one row per batch
        k_out_ref[:, pl.ds(0, P), :] = k_past_ref[...]
        v_out_ref[:, pl.ds(0, P), :] = v_past_ref[...]
        for b in range(B):
            k_out_ref[b, pl.ds(P, S), :] = qkv[b:b + 1, D:2 * D]
            v_out_ref[b, pl.ds(P, S), :] = qkv[b:b + 1, 2 * D:3 * D]
            att_ref[pl.ds(b, 1), :] = mha(qkv[b:b + 1, 0:D],
                                          k_out_ref[b], v_out_ref[b],
                                          sbias_ref[b])
        hidden = hidden + jnp.dot(att_ref[...], wo0_ref[l],
                                  preferred_element_type=jnp.float32)

        # ------------- cross-attention (cached encoder K/V) -------------
        normed = rms(hidden, ln1_ref[l])
        q_all = jnp.dot(normed, wq1_ref[l],
                        preferred_element_type=jnp.float32)          # (B, D)
        for b in range(B):
            att_ref[pl.ds(b, 1), :] = mha(q_all[b:b + 1, :],
                                          ck_ref[b], cv_ref[b],
                                          ebias_ref[b])
        hidden = hidden + jnp.dot(att_ref[...], wo1_ref[l],
                                  preferred_element_type=jnp.float32)

        # ------------------------- feed-forward -------------------------
        normed = rms(hidden, ln2_ref[l])
        ffh = jnp.maximum(
            jnp.dot(normed, wi_ref[l], preferred_element_type=jnp.float32), 0.0)
        hidden = hidden + jnp.dot(ffh, woff_ref[l],
                                  preferred_element_type=jnp.float32)

    # ---------------- final RMSNorm + tied LM head ----------------
    normed = rms(hidden, fln_ref[...])        # fln already carries the D**-0.5 scale
    logits_ref[...] = jnp.dot(normed, lmhead_ref[...],
                              preferred_element_type=jnp.float32)


# ----------------------------- JAX glue (under jit) --------------------------

def _relative_position_bucket(rel_pos):
    # T5 decoder bucketing (bidirectional=False)
    rp = -jnp.minimum(rel_pos, 0)
    max_exact = NUM_BUCKETS // 2
    is_small = rp < max_exact
    rp_f = jnp.maximum(rp, 1).astype(jnp.float32)
    val_if_large = max_exact + (
        jnp.log(rp_f / max_exact)
        / jnp.log(MAX_DIST / max_exact)
        * (NUM_BUCKETS - max_exact)
    ).astype(jnp.int32)
    val_if_large = jnp.minimum(val_if_large, NUM_BUCKETS - 1)
    return jnp.where(is_small, rp, val_if_large)


def t5_decoder_forward(params, input_ids, attention_mask, encoder_output,
                       past_key_values):
    """One decode step; mirrors the fastT5 decoder-with-past ONNX graph."""
    del encoder_output          # cross-attention K/V come from the cache
    b, s = input_ids.shape      # s == S == 1 (incremental decoding)
    t_self = P + s

    # --- tiny glue, fused by jit around the single Pallas call ---
    emb = jnp.take(params["embed"], input_ids[:, 0], axis=0)             # (B, D)

    q_pos = jnp.arange(t_self - s, t_self)[:, None]                      # (S, 1)
    k_pos = jnp.arange(t_self)[None, :]                                  # (1, T)
    buckets = _relative_position_bucket(k_pos - q_pos)                   # (S, T)
    rel = jnp.transpose(params["rel_bias"][buckets], (2, 0, 1))          # (H, S, T)
    causal = jnp.where(k_pos > q_pos, -1e9, 0.0)[None]                   # (1, S, T)
    sbias_ht = (rel + causal)[:, 0, :]                                   # (H, T)
    sbias = jnp.broadcast_to(sbias_ht.T[None], (b, t_self, H))           # (B, T, H)

    ebias = ((1.0 - attention_mask) * -1e9)[:, :, None]                  # (B, E, 1)
    ebias = jnp.broadcast_to(ebias, (b, E, H))                           # (B, E, H)

    # 0/1 head-segment matrices for block-diagonal (all-heads-at-once) attention
    head_of_lane = jnp.arange(D) // DK
    seg = (head_of_lane[:, None] == jnp.arange(H)[None, :]).astype(jnp.float32)  # (D, H)
    seg_t = seg.T                                                                  # (H, D)

    fln = (params["final_ln"] * (D ** -0.5)).reshape(1, D)   # fold tied-embed scale

    # Head-concatenated cache layouts (B, T, D); conversion is host-side & tiny.
    cache_in = []
    for (sk, sv, ck, cv) in past_key_values:
        cache_in += [
            sk.transpose(0, 2, 1, 3).reshape(b, P, D),
            sv.transpose(0, 2, 1, 3).reshape(b, P, D),
            ck.transpose(0, 2, 1, 3).reshape(b, E, D),
            cv.transpose(0, 2, 1, 3).reshape(b, E, D),
        ]

    out_shape = [jax.ShapeDtypeStruct((b, V), jnp.float32)]
    for _ in range(L):
        out_shape += [jax.ShapeDtypeStruct((b, t_self, D), jnp.float32),
                      jax.ShapeDtypeStruct((b, t_self, D), jnp.float32)]

    outs = pl.pallas_call(
        _t5_decode_step_kernel,
        out_shape=tuple(out_shape),
        scratch_shapes=[pltpu.VMEM((b, D), jnp.float32)],
        compiler_params=pltpu.CompilerParams(vmem_limit_bytes=32 * 1024 * 1024),
    )(emb, sbias, ebias, seg, seg_t, *cache_in,
      params["ln0"], params["ln1"], params["ln2"],
      params["wqkv"], params["wo0"], params["wq1"], params["wo1"],
      params["wi"], params["wo_ff"], fln, params["lm_head"])

    logits = outs[0].reshape(b, s, V)
    new_past = []
    for l in range(L):
        k_new = outs[1 + 2 * l].reshape(b, t_self, H, DK).transpose(0, 2, 1, 3)
        v_new = outs[2 + 2 * l].reshape(b, t_self, H, DK).transpose(0, 2, 1, 3)
        # cross-attention K/V pass through unchanged (decoder-with-past graph)
        new_past.append((k_new, v_new, past_key_values[l][2], past_key_values[l][3]))
    return logits, tuple(new_past)


t5_decoder_step = jax.jit(t5_decoder_forward)


# ----------------------------- params / inputs ------------------------------

def init_params(key):
    k_embed, k_rel, k_layers = jax.random.split(key, 3)

    def nrm(k, shape):
        return jax.random.normal(k, shape, jnp.float32) * 0.05

    lk = jax.random.split(k_layers, 6)
    embed = nrm(k_embed, (V, D))
    return {
        "embed": embed,
        "lm_head": embed.T,                       # tied weights, pre-transposed ONCE
        "rel_bias": nrm(k_rel, (NUM_BUCKETS, H)),
        "final_ln": jnp.ones((D,), jnp.float32),
        "ln0": jnp.ones((L, 1, D), jnp.float32),
        "ln1": jnp.ones((L, 1, D), jnp.float32),
        "ln2": jnp.ones((L, 1, D), jnp.float32),
        "wqkv": nrm(lk[0], (L, D, 3 * D)),        # fused Q/K/V projection
        "wo0": nrm(lk[1], (L, D, D)),
        "wq1": nrm(lk[2], (L, D, D)),
        "wo1": nrm(lk[3], (L, D, D)),
        "wi": nrm(lk[4], (L, D, DFF)),
        "wo_ff": nrm(lk[5], (L, DFF, D)),
    }


if __name__ == "__main__":
    root = jax.random.PRNGKey(0)
    k_par, k_ids, k_enc, k_pkv = jax.random.split(root, 4)
    params = init_params(k_par)

    input_ids = jax.random.randint(k_ids, (B, S), 0, V, dtype=jnp.int32)
    lengths = jnp.array([E, E - 3], jnp.int32)
    attention_mask = (jnp.arange(E)[None, :] < lengths[:, None]).astype(jnp.float32)
    encoder_output = jax.random.normal(k_enc, (B, E, D), jnp.float32)

    pkv_keys = jax.random.split(k_pkv, L * 4)
    past_key_values = tuple(
        (
            jax.random.normal(pkv_keys[4 * l + 0], (B, H, P, DK), jnp.float32),
            jax.random.normal(pkv_keys[4 * l + 1], (B, H, P, DK), jnp.float32),
            jax.random.normal(pkv_keys[4 * l + 2], (B, H, E, DK), jnp.float32),
            jax.random.normal(pkv_keys[4 * l + 3], (B, H, E, DK), jnp.float32),
        )
        for l in range(L)
    )

    logits, new_past = t5_decoder_step(
        params, input_ids, attention_mask, encoder_output, past_key_values)

    jax.block_until_ready(logits)
    jax.block_until_ready(new_past)

    assert logits.shape == (B, S, V)
    assert len(new_past) == L and len(new_past[0]) == 4
    assert new_past[0][0].shape == (B, H, P + S, DK)
    assert new_past[0][2].shape == (B, H, E, DK)
    assert bool(jnp.isfinite(logits).all())
    # sanity: the past slab of the grown self-attention cache passed through intact
    assert bool(jnp.allclose(new_past[0][0][:, :, :P, :], past_key_values[0][0],
                             atol=1e-6))
    print("KERNEL_OK")
</pallas_src>

<mosaic_0001>
module attributes {stable_mosaic.version = 11 : i64} {
  func.func @_t5_decode_step_kernel(%arg0: memref<2x32xf32, #tpu.memory_space<vmem>>, %arg1: memref<2x4x4xf32, #tpu.memory_space<vmem>>, %arg2: memref<2x8x4xf32, #tpu.memory_space<vmem>>, %arg3: memref<32x4xf32, #tpu.memory_space<vmem>>, %arg4: memref<4x32xf32, #tpu.memory_space<vmem>>, %arg5: memref<2x3x32xf32, #tpu.memory_space<vmem>>, %arg6: memref<2x3x32xf32, #tpu.memory_space<vmem>>, %arg7: memref<2x8x32xf32, #tpu.memory_space<vmem>>, %arg8: memref<2x8x32xf32, #tpu.memory_space<vmem>>, %arg9: memref<2x3x32xf32, #tpu.memory_space<vmem>>, %arg10: memref<2x3x32xf32, #tpu.memory_space<vmem>>, %arg11: memref<2x8x32xf32, #tpu.memory_space<vmem>>, %arg12: memref<2x8x32xf32, #tpu.memory_space<vmem>>, %arg13: memref<2x1x32xf32, #tpu.memory_space<vmem>>, %arg14: memref<2x1x32xf32, #tpu.memory_space<vmem>>, %arg15: memref<2x1x32xf32, #tpu.memory_space<vmem>>, %arg16: memref<2x32x96xf32, #tpu.memory_space<vmem>>, %arg17: memref<2x32x32xf32, #tpu.memory_space<vmem>>, %arg18: memref<2x32x32xf32, #tpu.memory_space<vmem>>, %arg19: memref<2x32x32xf32, #tpu.memory_space<vmem>>, %arg20: memref<2x32x64xf32, #tpu.memory_space<vmem>>, %arg21: memref<2x64x32xf32, #tpu.memory_space<vmem>>, %arg22: memref<1x32xf32, #tpu.memory_space<vmem>>, %arg23: memref<32x128xf32, #tpu.memory_space<vmem>>, %arg24: memref<2x128xf32, #tpu.memory_space<vmem>>, %arg25: memref<2x4x32xf32, #tpu.memory_space<vmem>>, %arg26: memref<2x4x32xf32, #tpu.memory_space<vmem>>, %arg27: memref<2x4x32xf32, #tpu.memory_space<vmem>>, %arg28: memref<2x4x32xf32, #tpu.memory_space<vmem>>, %arg29: memref<2x32xf32, #tpu.memory_space<vmem>>) attributes {dimension_semantics = [], scalar_prefetch = 0 : i64, scratch_operands = 1 : i64, tpu.core_type = #tpu.core_type<tc>} {
    %c0 = arith.constant 0 : index
    %c0_0 = arith.constant 0 : index
    %0 = vector.load %arg3[%c0, %c0_0] : memref<32x4xf32, #tpu.memory_space<vmem>>, vector<32x4xf32>
    %c0_1 = arith.constant 0 : index
    %c0_2 = arith.constant 0 : index
    %1 = vector.load %arg4[%c0_1, %c0_2] : memref<4x32xf32, #tpu.memory_space<vmem>>, vector<4x32xf32>
    %c0_3 = arith.constant 0 : index
    %c0_4 = arith.constant 0 : index
    %2 = vector.load %arg0[%c0_3, %c0_4] : memref<2x32xf32, #tpu.memory_space<vmem>>, vector<2x32xf32>
    %c0_5 = arith.constant 0 : index
    %c0_6 = arith.constant 0 : index
    %c0_7 = arith.constant 0 : index
    %3 = vector.load %arg13[%c0_5, %c0_6, %c0_7] : memref<2x1x32xf32, #tpu.memory_space<vmem>>, vector<1x1x32xf32>
    %4 = vector.shape_cast %3 : vector<1x1x32xf32> to vector<1x32xf32>
    %5 = arith.mulf %2, %2 : vector<2x32xf32>
    %cst = arith.constant dense<0.000000e+00> : vector<2xf32>
    %6 = vector.multi_reduction <add>, %5, %cst [1] : vector<2x32xf32> to vector<2xf32>
    %7 = vector.shape_cast %6 : vector<2xf32> to vector<2x1xf32>
    %cst_8 = arith.constant 3.200000e+01 : f32
    %8 = vector.broadcast %cst_8 : f32 to vector<2x1xf32>
    %9 = arith.divf %7, %8 : vector<2x1xf32>
    %cst_9 = arith.constant 9.99999997E-7 : f32
    %10 = vector.broadcast %cst_9 : f32 to vector<2x1xf32>
    %11 = arith.addf %9, %10 : vector<2x1xf32>
    %12 = math.rsqrt %11 : vector<2x1xf32>
    %13 = vector.broadcast %12 : vector<2x1xf32> to vector<2x32xf32>
    %14 = arith.mulf %2, %13 : vector<2x32xf32>
    %15 = vector.broadcast %4 : vector<1x32xf32> to vector<2x32xf32>
    %16 = arith.mulf %14, %15 : vector<2x32xf32>
    %c0_10 = arith.constant 0 : index
    %c0_11 = arith.constant 0 : index
    %c0_12 = arith.constant 0 : index
    %17 = vector.load %arg16[%c0_10, %c0_11, %c0_12] : memref<2x32x96xf32, #tpu.memory_space<vmem>>, vector<1x32x96xf32>
    %18 = vector.shape_cast %17 : vector<1x32x96xf32> to vector<32x96xf32>
    %cst_13 = arith.constant dense<0.000000e+00> : vector<2x96xf32>
    %19 = tpu.matmul %16, %18, %cst_13 {dimension_numbers = #tpu.dot_dimension_numbers<[1], [0], [0], [1], [0, 0, 1, 1], [], []>} : vector<2x32xf32>, vector<32x96xf32>, vector<2x96xf32> -> vector<2x96xf32>
    %c0_14 = arith.constant 0 : index
    %c0_15 = arith.constant 0 : index
    %c0_16 = arith.constant 0 : index
    %20 = vector.load %arg5[%c0_14, %c0_15, %c0_16] : memref<2x3x32xf32, #tpu.memory_space<vmem>>, vector<2x3x32xf32>
    %c0_17 = arith.constant 0 : index
    %c0_18 = arith.constant 0 : index
    %c0_19 = arith.constant 0 : index
    %21 = vector.load %arg25[%c0_17, %c0_18, %c0_19] : memref<2x4x32xf32, #tpu.memory_space<vmem>>, vector<2x3x32xf32>
    tpu.vector_store %arg25[%c0_17, %c0_18, %c0_19], %20 {strides = array<i32>} : memref<2x4x32xf32, #tpu.memory_space<vmem>>, vector<2x3x32xf32>,
    %c0_20 = arith.constant 0 : index
    %c0_21 = arith.constant 0 : index
    %c0_22 = arith.constant 0 : index
    %22 = vector.load %arg6[%c0_20, %c0_21, %c0_22] : memref<2x3x32xf32, #tpu.memory_space<vmem>>, vector<2x3x32xf32>
    %c0_23 = arith.constant 0 : index
    %c0_24 = arith.constant 0 : index
    %c0_25 = arith.constant 0 : index
    %23 = vector.load %arg26[%c0_23, %c0_24, %c0_25] : memref<2x4x32xf32, #tpu.memory_space<vmem>>, vector<2x3x32xf32>
    tpu.vector_store %arg26[%c0_23, %c0_24, %c0_25], %22 {strides = array<i32>} : memref<2x4x32xf32, #tpu.memory_space<vmem>>, vector<2x3x32xf32>,
    %24 = vector.extract_strided_slice %19 {offsets = [0, 32], sizes = [1, 32], strides = [1, 1]} : vector<2x96xf32> to vector<1x32xf32>
    %c0_26 = arith.constant 0 : index
    %c3 = arith.constant 3 : index
    %c0_27 = arith.constant 0 : index
    %25 = vector.load %arg25[%c0_26, %c3, %c0_27] : memref<2x4x32xf32, #tpu.memory_space<vmem>>, vector<1x1x32xf32>
    %26 = vector.shape_cast %25 : vector<1x1x32xf32> to vector<1x32xf32>
    %27 = vector.shape_cast %24 : vector<1x32xf32> to vector<1x1x32xf32>
    tpu.vector_store %arg25[%c0_26, %c3, %c0_27], %27 {strides = array<i32>} : memref<2x4x32xf32, #tpu.memory_space<vmem>>, vector<1x1x32xf32>,
    %28 = vector.extract_strided_slice %19 {offsets = [0, 64], sizes = [1, 32], strides = [1, 1]} : vector<2x96xf32> to vector<1x32xf32>
    %c0_28 = arith.constant 0 : index
    %c3_29 = arith.constant 3 : index
    %c0_30 = arith.constant 0 : index
    %29 = vector.load %arg26[%c0_28, %c3_29, %c0_30] : memref<2x4x32xf32, #tpu.memory_space<vmem>>, vector<1x1x32xf32>
    %30 = vector.shape_cast %29 : vector<1x1x32xf32> to vector<1x32xf32>
    %31 = vector.shape_cast %28 : vector<1x32xf32> to vector<1x1x32xf32>
    tpu.vector_store %arg26[%c0_28, %c3_29, %c0_30], %31 {strides = array<i32>} : memref<2x4x32xf32, #tpu.memory_space<vmem>>, vector<1x1x32xf32>,
    %32 = vector.extract_strided_slice %19 {offsets = [0, 0], sizes = [1, 32], strides = [1, 1]} : vector<2x96xf32> to vector<1x32xf32>
    %c0_31 = arith.constant 0 : index
    %c0_32 = arith.constant 0 : index
    %c0_33 = arith.constant 0 : index
    %33 = vector.load %arg25[%c0_31, %c0_32, %c0_33] : memref<2x4x32xf32, #tpu.memory_space<vmem>>, vector<1x4x32xf32>
    %34 = vector.shape_cast %33 : vector<1x4x32xf32> to vector<4x32xf32>
    %c0_34 = arith.constant 0 : index
    %c0_35 = arith.constant 0 : index
    %c0_36 = arith.constant 0 : index
    %35 = vector.load %arg26[%c0_34, %c0_35, %c0_36] : memref<2x4x32xf32, #tpu.memory_space<vmem>>, vector<1x4x32xf32>
    %36 = vector.shape_cast %35 : vector<1x4x32xf32> to vector<4x32xf32>
    %c0_37 = arith.constant 0 : index
    %c0_38 = arith.constant 0 : index
    %c0_39 = arith.constant 0 : index
    %37 = vector.load %arg1[%c0_37, %c0_38, %c0_39] : memref<2x4x4xf32, #tpu.memory_space<vmem>>, vector<1x4x4xf32>
    %38 = vector.shape_cast %37 : vector<1x4x4xf32> to vector<4x4xf32>
    %39 = vector.broadcast %32 : vector<1x32xf32> to vector<4x32xf32>
    %40 = arith.mulf %39, %34 : vector<4x32xf32>
    %cst_40 = arith.constant dense<0.000000e+00> : vector<4x4xf32>
    %41 = tpu.matmul %40, %0, %cst_40 {dimension_numbers = #tpu.dot_dimension_numbers<[1], [0], [0], [1], [0, 0, 1, 1], [], []>} : vector<4x32xf32>, vector<32x4xf32>, vector<4x4xf32> -> vector<4x4xf32>
    %42 = arith.addf %41, %38 : vector<4x4xf32>
    %cst_41 = arith.constant dense<0xFF800000> : vector<4xf32>
    %43 = vector.multi_reduction <maximumf>, %42, %cst_41 [0] : vector<4x4xf32> to vector<4xf32>
    %44 = vector.shape_cast %43 : vector<4xf32> to vector<1x4xf32>
    %45 = vector.broadcast %44 : vector<1x4xf32> to vector<4x4xf32>
    %46 = arith.subf %42, %45 : vector<4x4xf32>
    %47 = math.exp %46 : vector<4x4xf32>
    %cst_42 = arith.constant dense<0.000000e+00> : vector<4xf32>
    %48 = vector.multi_reduction <add>, %47, %cst_42 [0] : vector<4x4xf32> to vector<4xf32>
    %49 = vector.shape_cast %48 : vector<4xf32> to vector<1x4xf32>
    %50 = tpu.reciprocal %49 {approx = true} : vector<1x4xf32> -> vector<1x4xf32>
    %51 = vector.broadcast %50 : vector<1x4xf32> to vector<4x4xf32>
    %52 = arith.mulf %47, %51 : vector<4x4xf32>
    %cst_43 = arith.constant dense<0.000000e+00> : vector<4x32xf32>
    %53 = tpu.matmul %52, %1, %cst_43 {dimension_numbers = #tpu.dot_dimension_numbers<[1], [0], [0], [1], [0, 0, 1, 1], [], []>} : vector<4x4xf32>, vector<4x32xf32>, vector<4x32xf32> -> vector<4x32xf32>
    %54 = arith.mulf %53, %36 : vector<4x32xf32>
    %cst_44 = arith.constant dense<0.000000e+00> : vector<32xf32>
    %55 = vector.multi_reduction <add>, %54, %cst_44 [0] : vector<4x32xf32> to vector<32xf32>
    %56 = vector.shape_cast %55 : vector<32xf32> to vector<1x32xf32>
    %c0_45 = arith.constant 0 : index
    %c0_46 = arith.constant 0 : index
    %57 = vector.load %arg29[%c0_45, %c0_46] : memref<2x32xf32, #tpu.memory_space<vmem>>, vector<1x32xf32>
    tpu.vector_store %arg29[%c0_45, %c0_46], %56 {strides = array<i32>} : memref<2x32xf32, #tpu.memory_space<vmem>>, vector<1x32xf32>,
    %58 = vector.extract_strided_slice %19 {offsets = [1, 32], sizes = [1, 32], strides = [1, 1]} : vector<2x96xf32> to vector<1x32xf32>
    %c1 = arith.constant 1 : index
    %c3_47 = arith.constant 3 : index
    %c0_48 = arith.constant 0 : index
    %59 = vector.load %arg25[%c1, %c3_47, %c0_48] : memref<2x4x32xf32, #tpu.memory_space<vmem>>, vector<1x1x32xf32>
    %60 = vector.shape_cast %59 : vector<1x1x32xf32> to vector<1x32xf32>
    %61 = vector.shape_cast %58 : vector<1x32xf32> to vector<1x1x32xf32>
    tpu.vector_store %arg25[%c1, %c3_47, %c0_48], %61 {strides = array<i32>} : memref<2x4x32xf32, #tpu.memory_space<vmem>>, vector<1x1x32xf32>,
    %62 = vector.extract_strided_slice %19 {offsets = [1, 64], sizes = [1, 32], strides = [1, 1]} : vector<2x96xf32> to vector<1x32xf32>
    %c1_49 = arith.constant 1 : index
    %c3_50 = arith.constant 3 : index
    %c0_51 = arith.constant 0 : index
    %63 = vector.load %arg26[%c1_49, %c3_50, %c0_51] : memref<2x4x32xf32, #tpu.memory_space<vmem>>, vector<1x1x32xf32>
    %64 = vector.shape_cast %63 : vector<1x1x32xf32> to vector<1x32xf32>
    %65 = vector.shape_cast %62 : vector<1x32xf32> to vector<1x1x32xf32>
    tpu.vector_store %arg26[%c1_49, %c3_50, %c0_51], %65 {strides = array<i32>} : memref<2x4x32xf32, #tpu.memory_space<vmem>>, vector<1x1x32xf32>,
    %66 = vector.extract_strided_slice %19 {offsets = [1, 0], sizes = [1, 32], strides = [1, 1]} : vector<2x96xf32> to vector<1x32xf32>
    %c1_52 = arith.constant 1 : index
    %c0_53 = arith.constant 0 : index
    %c0_54 = arith.constant 0 : index
    %67 = vector.load %arg25[%c1_52, %c0_53, %c0_54] : memref<2x4x32xf32, #tpu.memory_space<vmem>>, vector<1x4x32xf32>
    %68 = vector.shape_cast %67 : vector<1x4x32xf32> to vector<4x32xf32>
    %c1_55 = arith.constant 1 : index
    %c0_56 = arith.constant 0 : index
    %c0_57 = arith.constant 0 : index
    %69 = vector.load %arg26[%c1_55, %c0_56, %c0_57] : memref<2x4x32xf32, #tpu.memory_space<vmem>>, vector<1x4x32xf32>
    %70 = vector.shape_cast %69 : vector<1x4x32xf32> to vector<4x32xf32>
    %c1_58 = arith.constant 1 : index
    %c0_59 = arith.constant 0 : index
    %c0_60 = arith.constant 0 : index
    %71 = vector.load %arg1[%c1_58, %c0_59, %c0_60] : memref<2x4x4xf32, #tpu.memory_space<vmem>>, vector<1x4x4xf32>
    %72 = vector.shape_cast %71 : vector<1x4x4xf32> to vector<4x4xf32>
    %73 = vector.broadcast %66 : vector<1x32xf32> to vector<4x32xf32>
    %74 = arith.mulf %73, %68 : vector<4x32xf32>
    %cst_61 = arith.constant dense<0.000000e+00> : vector<4x4xf32>
    %75 = tpu.matmul %74, %0, %cst_61 {dimension_numbers = #tpu.dot_dimension_numbers<[1], [0], [0], [1], [0, 0, 1, 1], [], []>} : vector<4x32xf32>, vector<32x4xf32>, vector<4x4xf32> -> vector<4x4xf32>
    %76 = arith.addf %75, %72 : vector<4x4xf32>
    %cst_62 = arith.constant dense<0xFF800000> : vector<4xf32>
    %77 = vector.multi_reduction <maximumf>, %76, %cst_62 [0] : vector<4x4xf32> to vector<4xf32>
    %78 = vector.shape_cast %77 : vector<4xf32> to vector<1x4xf32>
    %79 = vector.broadcast %78 : vector<1x4xf32> to vector<4x4xf32>
    %80 = arith.subf %76, %79 : vector<4x4xf32>
    %81 = math.exp %80 : vector<4x4xf32>
    %cst_63 = arith.constant dense<0.000000e+00> : vector<4xf32>
    %82 = vector.multi_reduction <add>, %81, %cst_63 [0] : vector<4x4xf32> to vector<4xf32>
    %83 = vector.shape_cast %82 : vector<4xf32> to vector<1x4xf32>
    %84 = tpu.reciprocal %83 {approx = true} : vector<1x4xf32> -> vector<1x4xf32>
    %85 = vector.broadcast %84 : vector<1x4xf32> to vector<4x4xf32>
    %86 = arith.mulf %81, %85 : vector<4x4xf32>
    %cst_64 = arith.constant dense<0.000000e+00> : vector<4x32xf32>
    %87 = tpu.matmul %86, %1, %cst_64 {dimension_numbers = #tpu.dot_dimension_numbers<[1], [0], [0], [1], [0, 0, 1, 1], [], []>} : vector<4x4xf32>, vector<4x32xf32>, vector<4x32xf32> -> vector<4x32xf32>
    %88 = arith.mulf %87, %70 : vector<4x32xf32>
    %cst_65 = arith.constant dense<0.000000e+00> : vector<32xf32>
    %89 = vector.multi_reduction <add>, %88, %cst_65 [0] : vector<4x32xf32> to vector<32xf32>
    %90 = vector.shape_cast %89 : vector<32xf32> to vector<1x32xf32>
    %c1_66 = arith.constant 1 : index
    %c0_67 = arith.constant 0 : index
    %91 = vector.load %arg29[%c1_66, %c0_67] : memref<2x32xf32, #tpu.memory_space<vmem>>, vector<1x32xf32>
    tpu.vector_store %arg29[%c1_66, %c0_67], %90 {strides = array<i32>} : memref<2x32xf32, #tpu.memory_space<vmem>>, vector<1x32xf32>,
    %c0_68 = arith.constant 0 : index
    %c0_69 = arith.constant 0 : index
    %92 = vector.load %arg29[%c0_68, %c0_69] : memref<2x32xf32, #tpu.memory_space<vmem>>, vector<2x32xf32>
    %c0_70 = arith.constant 0 : index
    %c0_71 = arith.constant 0 : index
    %c0_72 = arith.constant 0 : index
    %93 = vector.load %arg17[%c0_70, %c0_71, %c0_72] : memref<2x32x32xf32, #tpu.memory_space<vmem>>, vector<1x32x32xf32>
    %94 = vector.shape_cast %93 : vector<1x32x32xf32> to vector<32x32xf32>
    %cst_73 = arith.constant dense<0.000000e+00> : vector<2x32xf32>
    %95 = tpu.matmul %92, %94, %cst_73 {dimension_numbers = #tpu.dot_dimension_numbers<[1], [0], [0], [1], [0, 0, 1, 1], [], []>} : vector<2x32xf32>, vector<32x32xf32>, vector<2x32xf32> -> vector<2x32xf32>
    %96 = arith.addf %2, %95 : vector<2x32xf32>
    %c0_74 = arith.constant 0 : index
    %c0_75 = arith.constant 0 : index
    %c0_76 = arith.constant 0 : index
    %97 = vector.load %arg14[%c0_74, %c0_75, %c0_76] : memref<2x1x32xf32, #tpu.memory_space<vmem>>, vector<1x1x32xf32>
    %98 = vector.shape_cast %97 : vector<1x1x32xf32> to vector<1x32xf32>
    %99 = arith.mulf %96, %96 : vector<2x32xf32>
    %cst_77 = arith.constant dense<0.000000e+00> : vector<2xf32>
    %100 = vector.multi_reduction <add>, %99, %cst_77 [1] : vector<2x32xf32> to vector<2xf32>
    %101 = vector.shape_cast %100 : vector<2xf32> to vector<2x1xf32>
    %cst_78 = arith.constant 3.200000e+01 : f32
    %102 = vector.broadcast %cst_78 : f32 to vector<2x1xf32>
    %103 = arith.divf %101, %102 : vector<2x1xf32>
    %cst_79 = arith.constant 9.99999997E-7 : f32
    %104 = vector.broadcast %cst_79 : f32 to vector<2x1xf32>
    %105 = arith.addf %103, %104 : vector<2x1xf32>
    %106 = math.rsqrt %105 : vector<2x1xf32>
    %107 = vector.broadcast %106 : vector<2x1xf32> to vector<2x32xf32>
    %108 = arith.mulf %96, %107 : vector<2x32xf32>
    %109 = vector.broadcast %98 : vector<1x32xf32> to vector<2x32xf32>
    %110 = arith.mulf %108, %109 : vector<2x32xf32>
    %c0_80 = arith.constant 0 : index
    %c0_81 = arith.constant 0 : index
    %c0_82 = arith.constant 0 : index
    %111 = vector.load %arg18[%c0_80, %c0_81, %c0_82] : memref<2x32x32xf32, #tpu.memory_space<vmem>>, vector<1x32x32xf32>
    %112 = vector.shape_cast %111 : vector<1x32x32xf32> to vector<32x32xf32>
    %cst_83 = arith.constant dense<0.000000e+00> : vector<2x32xf32>
    %113 = tpu.matmul %110, %112, %cst_83 {dimension_numbers = #tpu.dot_dimension_numbers<[1], [0], [0], [1], [0, 0, 1, 1], [], []>} : vector<2x32xf32>, vector<32x32xf32>, vector<2x32xf32> -> vector<2x32xf32>
    %114 = vector.extract_strided_slice %113 {offsets = [0, 0], sizes = [1, 32], strides = [1, 1]} : vector<2x32xf32> to vector<1x32xf32>
    %c0_84 = arith.constant 0 : index
    %c0_85 = arith.constant 0 : index
    %c0_86 = arith.constant 0 : index
    %115 = vector.load %arg7[%c0_84, %c0_85, %c0_86] : memref<2x8x32xf32, #tpu.memory_space<vmem>>, vector<1x8x32xf32>
    %116 = vector.shape_cast %115 : vector<1x8x32xf32> to vector<8x32xf32>
    %c0_87 = arith.constant 0 : index
    %c0_88 = arith.constant 0 : index
    %c0_89 = arith.constant 0 : index
    %117 = vector.load %arg8[%c0_87, %c0_88, %c0_89] : memref<2x8x32xf32, #tpu.memory_space<vmem>>, vector<1x8x32xf32>
    %118 = vector.shape_cast %117 : vector<1x8x32xf32> to vector<8x32xf32>
    %c0_90 = arith.constant 0 : index
    %c0_91 = arith.constant 0 : index
    %c0_92 = arith.constant 0 : index
    %119 = vector.load %arg2[%c0_90, %c0_91, %c0_92] : memref<2x8x4xf32, #tpu.memory_space<vmem>>, vector<1x8x4xf32>
    %120 = vector.shape_cast %119 : vector<1x8x4xf32> to vector<8x4xf32>
    %121 = vector.broadcast %114 : vector<1x32xf32> to vector<8x32xf32>
    %122 = arith.mulf %121, %116 : vector<8x32xf32>
    %cst_93 = arith.constant dense<0.000000e+00> : vector<8x4xf32>
    %123 = tpu.matmul %122, %0, %cst_93 {dimension_numbers = #tpu.dot_dimension_numbers<[1], [0], [0], [1], [0, 0, 1, 1], [], []>} : vector<8x32xf32>, vector<32x4xf32>, vector<8x4xf32> -> vector<8x4xf32>
    %124 = arith.addf %123, %120 : vector<8x4xf32>
    %cst_94 = arith.constant dense<0xFF800000> : vector<4xf32>
    %125 = vector.multi_reduction <maximumf>, %124, %cst_94 [0] : vector<8x4xf32> to vector<4xf32>
    %126 = vector.shape_cast %125 : vector<4xf32> to vector<1x4xf32>
    %127 = vector.broadcast %126 : vector<1x4xf32> to vector<8x4xf32>
    %128 = arith.subf %124, %127 : vector<8x4xf32>
    %129 = math.exp %128 : vector<8x4xf32>
    %cst_95 = arith.constant dense<0.000000e+00> : vector<4xf32>
    %130 = vector.multi_reduction <add>, %129, %cst_95 [0] : vector<8x4xf32> to vector<4xf32>
    %131 = vector.shape_cast %130 : vector<4xf32> to vector<1x4xf32>
    %132 = tpu.reciprocal %131 {approx = true} : vector<1x4xf32> -> vector<1x4xf32>
    %133 = vector.broadcast %132 : vector<1x4xf32> to vector<8x4xf32>
    %134 = arith.mulf %129, %133 : vector<8x4xf32>
    %cst_96 = arith.constant dense<0.000000e+00> : vector<8x32xf32>
    %135 = tpu.matmul %134, %1, %cst_96 {dimension_numbers = #tpu.dot_dimension_numbers<[1], [0], [0], [1], [0, 0, 1, 1], [], []>} : vector<8x4xf32>, vector<4x32xf32>, vector<8x32xf32> -> vector<8x32xf32>
    %136 = arith.mulf %135, %118 : vector<8x32xf32>
    %cst_97 = arith.constant dense<0.000000e+00> : vector<32xf32>
    %137 = vector.multi_reduction <add>, %136, %cst_97 [0] : vector<8x32xf32> to vector<32xf32>
    %138 = vector.shape_cast %137 : vector<32xf32> to vector<1x32xf32>
    %c0_98 = arith.constant 0 : index
    %c0_99 = arith.constant 0 : index
    %139 = vector.load %arg29[%c0_98, %c0_99] : memref<2x32xf32, #tpu.memory_space<vmem>>, vector<1x32xf32>
    tpu.vector_store %arg29[%c0_98, %c0_99], %138 {strides = array<i32>} : memref<2x32xf32, #tpu.memory_space<vmem>>, vector<1x32xf32>,
    %140 = vector.extract_strided_slice %113 {offsets = [1, 0], sizes = [1, 32], strides = [1, 1]} : vector<2x32xf32> to vector<1x32xf32>
    %c1_100 = arith.constant 1 : index
    %c0_101 = arith.constant 0 : index
    %c0_102 = arith.constant 0 : index
    %141 = vector.load %arg7[%c1_100, %c0_101, %c0_102] : memref<2x8x32xf32, #tpu.memory_space<vmem>>, vector<1x8x32xf32>
    %142 = vector.shape_cast %141 : vector<1x8x32xf32> to vector<8x32xf32>
    %c1_103 = arith.constant 1 : index
    %c0_104 = arith.constant 0 : index
    %c0_105 = arith.constant 0 : index
    %143 = vector.load %arg8[%c1_103, %c0_104, %c0_105] : memref<2x8x32xf32, #tpu.memory_space<vmem>>, vector<1x8x32xf32>
    %144 = vector.shape_cast %143 : vector<1x8x32xf32> to vector<8x32xf32>
    %c1_106 = arith.constant 1 : index
    %c0_107 = arith.constant 0 : index
    %c0_108 = arith.constant 0 : index
    %145 = vector.load %arg2[%c1_106, %c0_107, %c0_108] : memref<2x8x4xf32, #tpu.memory_space<vmem>>, vector<1x8x4xf32>
    %146 = vector.shape_cast %145 : vector<1x8x4xf32> to vector<8x4xf32>
    %147 = vector.broadcast %140 : vector<1x32xf32> to vector<8x32xf32>
    %148 = arith.mulf %147, %142 : vector<8x32xf32>
    %cst_109 = arith.constant dense<0.000000e+00> : vector<8x4xf32>
    %149 = tpu.matmul %148, %0, %cst_109 {dimension_numbers = #tpu.dot_dimension_numbers<[1], [0], [0], [1], [0, 0, 1, 1], [], []>} : vector<8x32xf32>, vector<32x4xf32>, vector<8x4xf32> -> vector<8x4xf32>
    %150 = arith.addf %149, %146 : vector<8x4xf32>
    %cst_110 = arith.constant dense<0xFF800000> : vector<4xf32>
    %151 = vector.multi_reduction <maximumf>, %150, %cst_110 [0] : vector<8x4xf32> to vector<4xf32>
    %152 = vector.shape_cast %151 : vector<4xf32> to vector<1x4xf32>
    %153 = vector.broadcast %152 : vector<1x4xf32> to vector<8x4xf32>
    %154 = arith.subf %150, %153 : vector<8x4xf32>
    %155 = math.exp %154 : vector<8x4xf32>
    %cst_111 = arith.constant dense<0.000000e+00> : vector<4xf32>
    %156 = vector.multi_reduction <add>, %155, %cst_111 [0] : vector<8x4xf32> to vector<4xf32>
    %157 = vector.shape_cast %156 : vector<4xf32> to vector<1x4xf32>
    %158 = tpu.reciprocal %157 {approx = true} : vector<1x4xf32> -> vector<1x4xf32>
    %159 = vector.broadcast %158 : vector<1x4xf32> to vector<8x4xf32>
    %160 = arith.mulf %155, %159 : vector<8x4xf32>
    %cst_112 = arith.constant dense<0.000000e+00> : vector<8x32xf32>
    %161 = tpu.matmul %160, %1, %cst_112 {dimension_numbers = #tpu.dot_dimension_numbers<[1], [0], [0], [1], [0, 0, 1, 1], [], []>} : vector<8x4xf32>, vector<4x32xf32>, vector<8x32xf32> -> vector<8x32xf32>
    %162 = arith.mulf %161, %144 : vector<8x32xf32>
    %cst_113 = arith.constant dense<0.000000e+00> : vector<32xf32>
    %163 = vector.multi_reduction <add>, %162, %cst_113 [0] : vector<8x32xf32> to vector<32xf32>
    %164 = vector.shape_cast %163 : vector<32xf32> to vector<1x32xf32>
    %c1_114 = arith.constant 1 : index
    %c0_115 = arith.constant 0 : index
    %165 = vector.load %arg29[%c1_114, %c0_115] : memref<2x32xf32, #tpu.memory_space<vmem>>, vector<1x32xf32>
    tpu.vector_store %arg29[%c1_114, %c0_115], %164 {strides = array<i32>} : memref<2x32xf32, #tpu.memory_space<vmem>>, vector<1x32xf32>,
    %c0_116 = arith.constant 0 : index
    %c0_117 = arith.constant 0 : index
    %166 = vector.load %arg29[%c0_116, %c0_117] : memref<2x32xf32, #tpu.memory_space<vmem>>, vector<2x32xf32>
    %c0_118 = arith.constant 0 : index
    %c0_119 = arith.constant 0 : index
    %c0_120 = arith.constant 0 : index
    %167 = vector.load %arg19[%c0_118, %c0_119, %c0_120] : memref<2x32x32xf32, #tpu.memory_space<vmem>>, vector<1x32x32xf32>
    %168 = vector.shape_cast %167 : vector<1x32x32xf32> to vector<32x32xf32>
    %cst_121 = arith.constant dense<0.000000e+00> : vector<2x32xf32>
    %169 = tpu.matmul %166, %168, %cst_121 {dimension_numbers = #tpu.dot_dimension_numbers<[1], [0], [0], [1], [0, 0, 1, 1], [], []>} : vector<2x32xf32>, vector<32x32xf32>, vector<2x32xf32> -> vector<2x32xf32>
    %170 = arith.addf %96, %169 : vector<2x32xf32>
    %c0_122 = arith.constant 0 : index
    %c0_123 = arith.constant 0 : index
    %c0_124 = arith.constant 0 : index
    %171 = vector.load %arg15[%c0_122, %c0_123, %c0_124] : memref<2x1x32xf32, #tpu.memory_space<vmem>>, vector<1x1x32xf32>
    %172 = vector.shape_cast %171 : vector<1x1x32xf32> to vector<1x32xf32>
    %173 = arith.mulf %170, %170 : vector<2x32xf32>
    %cst_125 = arith.constant dense<0.000000e+00> : vector<2xf32>
    %174 = vector.multi_reduction <add>, %173, %cst_125 [1] : vector<2x32xf32> to vector<2xf32>
    %175 = vector.shape_cast %174 : vector<2xf32> to vector<2x1xf32>
    %cst_126 = arith.constant 3.200000e+01 : f32
    %176 = vector.broadcast %cst_126 : f32 to vector<2x1xf32>
    %177 = arith.divf %175, %176 : vector<2x1xf32>
    %cst_127 = arith.constant 9.99999997E-7 : f32
    %178 = vector.broadcast %cst_127 : f32 to vector<2x1xf32>
    %179 = arith.addf %177, %178 : vector<2x1xf32>
    %180 = math.rsqrt %179 : vector<2x1xf32>
    %181 = vector.broadcast %180 : vector<2x1xf32> to vector<2x32xf32>
    %182 = arith.mulf %170, %181 : vector<2x32xf32>
    %183 = vector.broadcast %172 : vector<1x32xf32> to vector<2x32xf32>
    %184 = arith.mulf %182, %183 : vector<2x32xf32>
    %c0_128 = arith.constant 0 : index
    %c0_129 = arith.constant 0 : index
    %c0_130 = arith.constant 0 : index
    %185 = vector.load %arg20[%c0_128, %c0_129, %c0_130] : memref<2x32x64xf32, #tpu.memory_space<vmem>>, vector<1x32x64xf32>
    %186 = vector.shape_cast %185 : vector<1x32x64xf32> to vector<32x64xf32>
    %cst_131 = arith.constant dense<0.000000e+00> : vector<2x64xf32>
    %187 = tpu.matmul %184, %186, %cst_131 {dimension_numbers = #tpu.dot_dimension_numbers<[1], [0], [0], [1], [0, 0, 1, 1], [], []>} : vector<2x32xf32>, vector<32x64xf32>, vector<2x64xf32> -> vector<2x64xf32>
    %cst_132 = arith.constant 0.000000e+00 : f32
    %188 = vector.broadcast %cst_132 : f32 to vector<2x64xf32>
    %189 = arith.maximumf %187, %188 : vector<2x64xf32>
    %c0_133 = arith.constant 0 : index
    %c0_134 = arith.constant 0 : index
    %c0_135 = arith.constant 0 : index
    %190 = vector.load %arg21[%c0_133, %c0_134, %c0_135] : memref<2x64x32xf32, #tpu.memory_space<vmem>>, vector<1x64x32xf32>
    %191 = vector.shape_cast %190 : vector<1x64x32xf32> to vector<64x32xf32>
    %cst_136 = arith.constant dense<0.000000e+00> : vector<2x32xf32>
    %192 = tpu.matmul %189, %191, %cst_136 {dimension_numbers = #tpu.dot_dimension_numbers<[1], [0], [0], [1], [0, 0, 1, 1], [], []>} : vector<2x64xf32>, vector<64x32xf32>, vector<2x32xf32> -> vector<2x32xf32>
    %193 = arith.addf %170, %192 : vector<2x32xf32>
    %c1_137 = arith.constant 1 : index
    %c0_138 = arith.constant 0 : index
    %c0_139 = arith.constant 0 : index
    %194 = vector.load %arg13[%c1_137, %c0_138, %c0_139] : memref<2x1x32xf32, #tpu.memory_space<vmem>>, vector<1x1x32xf32>
    %195 = vector.shape_cast %194 : vector<1x1x32xf32> to vector<1x32xf32>
    %196 = arith.mulf %193, %193 : vector<2x32xf32>
    %cst_140 = arith.constant dense<0.000000e+00> : vector<2xf32>
    %197 = vector.multi_reduction <add>, %196, %cst_140 [1] : vector<2x32xf32> to vector<2xf32>
    %198 = vector.shape_cast %197 : vector<2xf32> to vector<2x1xf32>
    %cst_141 = arith.constant 3.200000e+01 : f32
    %199 = vector.broadcast %cst_141 : f32 to vector<2x1xf32>
    %200 = arith.divf %198, %199 : vector<2x1xf32>
    %cst_142 = arith.constant 9.99999997E-7 : f32
    %201 = vector.broadcast %cst_142 : f32 to vector<2x1xf32>
    %202 = arith.addf %200, %201 : vector<2x1xf32>
    %203 = math.rsqrt %202 : vector<2x1xf32>
    %204 = vector.broadcast %203 : vector<2x1xf32> to vector<2x32xf32>
    %205 = arith.mulf %193, %204 : vector<2x32xf32>
    %206 = vector.broadcast %195 : vector<1x32xf32> to vector<2x32xf32>
    %207 = arith.mulf %205, %206 : vector<2x32xf32>
    %c1_143 = arith.constant 1 : index
    %c0_144 = arith.constant 0 : index
    %c0_145 = arith.constant 0 : index
    %208 = vector.load %arg16[%c1_143, %c0_144, %c0_145] : memref<2x32x96xf32, #tpu.memory_space<vmem>>, vector<1x32x96xf32>
    %209 = vector.shape_cast %208 : vector<1x32x96xf32> to vector<32x96xf32>
    %cst_146 = arith.constant dense<0.000000e+00> : vector<2x96xf32>
    %210 = tpu.matmul %207, %209, %cst_146 {dimension_numbers = #tpu.dot_dimension_numbers<[1], [0], [0], [1], [0, 0, 1, 1], [], []>} : vector<2x32xf32>, vector<32x96xf32>, vector<2x96xf32> -> vector<2x96xf32>
    %c0_147 = arith.constant 0 : index
    %c0_148 = arith.constant 0 : index
    %c0_149 = arith.constant 0 : index
    %211 = vector.load %arg9[%c0_147, %c0_148, %c0_149] : memref<2x3x32xf32, #tpu.memory_space<vmem>>, vector<2x3x32xf32>
    %c0_150 = arith.constant 0 : index
    %c0_151 = arith.constant 0 : index
    %c0_152 = arith.constant 0 : index
    %212 = vector.load %arg27[%c0_150, %c0_151, %c0_152] : memref<2x4x32xf32, #tpu.memory_space<vmem>>, vector<2x3x32xf32>
    tpu.vector_store %arg27[%c0_150, %c0_151, %c0_152], %211 {strides = array<i32>} : memref<2x4x32xf32, #tpu.memory_space<vmem>>, vector<2x3x32xf32>,
    %c0_153 = arith.constant 0 : index
    %c0_154 = arith.constant 0 : index
    %c0_155 = arith.constant 0 : index
    %213 = vector.load %arg10[%c0_153, %c0_154, %c0_155] : memref<2x3x32xf32, #tpu.memory_space<vmem>>, vector<2x3x32xf32>
    %c0_156 = arith.constant 0 : index
    %c0_157 = arith.constant 0 : index
    %c0_158 = arith.constant 0 : index
    %214 = vector.load %arg28[%c0_156, %c0_157, %c0_158] : memref<2x4x32xf32, #tpu.memory_space<vmem>>, vector<2x3x32xf32>
    tpu.vector_store %arg28[%c0_156, %c0_157, %c0_158], %213 {strides = array<i32>} : memref<2x4x32xf32, #tpu.memory_space<vmem>>, vector<2x3x32xf32>,
    %215 = vector.extract_strided_slice %210 {offsets = [0, 32], sizes = [1, 32], strides = [1, 1]} : vector<2x96xf32> to vector<1x32xf32>
    %c0_159 = arith.constant 0 : index
    %c3_160 = arith.constant 3 : index
    %c0_161 = arith.constant 0 : index
    %216 = vector.load %arg27[%c0_159, %c3_160, %c0_161] : memref<2x4x32xf32, #tpu.memory_space<vmem>>, vector<1x1x32xf32>
    %217 = vector.shape_cast %216 : vector<1x1x32xf32> to vector<1x32xf32>
    %218 = vector.shape_cast %215 : vector<1x32xf32> to vector<1x1x32xf32>
    tpu.vector_store %arg27[%c0_159, %c3_160, %c0_161], %218 {strides = array<i32>} : memref<2x4x32xf32, #tpu.memory_space<vmem>>, vector<1x1x32xf32>,
    %219 = vector.extract_strided_slice %210 {offsets = [0, 64], sizes = [1, 32], strides = [1, 1]} : vector<2x96xf32> to vector<1x32xf32>
    %c0_162 = arith.constant 0 : index
    %c3_163 = arith.constant 3 : index
    %c0_164 = arith.constant 0 : index
    %220 = vector.load %arg28[%c0_162, %c3_163, %c0_164] : memref<2x4x32xf32, #tpu.memory_space<vmem>>, vector<1x1x32xf32>
    %221 = vector.shape_cast %220 : vector<1x1x32xf32> to vector<1x32xf32>
    %222 = vector.shape_cast %219 : vector<1x32xf32> to vector<1x1x32xf32>
    tpu.vector_store %arg28[%c0_162, %c3_163, %c0_164], %222 {strides = array<i32>} : memref<2x4x32xf32, #tpu.memory_space<vmem>>, vector<1x1x32xf32>,
    %223 = vector.extract_strided_slice %210 {offsets = [0, 0], sizes = [1, 32], strides = [1, 1]} : vector<2x96xf32> to vector<1x32xf32>
    %c0_165 = arith.constant 0 : index
    %c0_166 = arith.constant 0 : index
    %c0_167 = arith.constant 0 : index
    %224 = vector.load %arg27[%c0_165, %c0_166, %c0_167] : memref<2x4x32xf32, #tpu.memory_space<vmem>>, vector<1x4x32xf32>
    %225 = vector.shape_cast %224 : vector<1x4x32xf32> to vector<4x32xf32>
    %c0_168 = arith.constant 0 : index
    %c0_169 = arith.constant 0 : index
    %c0_170 = arith.constant 0 : index
    %226 = vector.load %arg28[%c0_168, %c0_169, %c0_170] : memref<2x4x32xf32, #tpu.memory_space<vmem>>, vector<1x4x32xf32>
    %227 = vector.shape_cast %226 : vector<1x4x32xf32> to vector<4x32xf32>
    %c0_171 = arith.constant 0 : index
    %c0_172 = arith.constant 0 : index
    %c0_173 = arith.constant 0 : index
    %228 = vector.load %arg1[%c0_171, %c0_172, %c0_173] : memref<2x4x4xf32, #tpu.memory_space<vmem>>, vector<1x4x4xf32>
    %229 = vector.shape_cast %228 : vector<1x4x4xf32> to vector<4x4xf32>
    %230 = vector.broadcast %223 : vector<1x32xf32> to vector<4x32xf32>
    %231 = arith.mulf %230, %225 : vector<4x32xf32>
    %cst_174 = arith.constant dense<0.000000e+00> : vector<4x4xf32>
    %232 = tpu.matmul %231, %0, %cst_174 {dimension_numbers = #tpu.dot_dimension_numbers<[1], [0], [0], [1], [0, 0, 1, 1], [], []>} : vector<4x32xf32>, vector<32x4xf32>, vector<4x4xf32> -> vector<4x4xf32>
    %233 = arith.addf %232, %229 : vector<4x4xf32>
    %cst_175 = arith.constant dense<0xFF800000> : vector<4xf32>
    %234 = vector.multi_reduction <maximumf>, %233, %cst_175 [0] : vector<4x4xf32> to vector<4xf32>
    %235 = vector.shape_cast %234 : vector<4xf32> to vector<1x4xf32>
    %236 = vector.broadcast %235 : vector<1x4xf32> to vector<4x4xf32>
    %237 = arith.subf %233, %236 : vector<4x4xf32>
    %238 = math.exp %237 : vector<4x4xf32>
    %cst_176 = arith.constant dense<0.000000e+00> : vector<4xf32>
    %239 = vector.multi_reduction <add>, %238, %cst_176 [0] : vector<4x4xf32> to vector<4xf32>
    %240 = vector.shape_cast %239 : vector<4xf32> to vector<1x4xf32>
    %241 = tpu.reciprocal %240 {approx = true} : vector<1x4xf32> -> vector<1x4xf32>
    %242 = vector.broadcast %241 : vector<1x4xf32> to vector<4x4xf32>
    %243 = arith.mulf %238, %242 : vector<4x4xf32>
    %cst_177 = arith.constant dense<0.000000e+00> : vector<4x32xf32>
    %244 = tpu.matmul %243, %1, %cst_177 {dimension_numbers = #tpu.dot_dimension_numbers<[1], [0], [0], [1], [0, 0, 1, 1], [], []>} : vector<4x4xf32>, vector<4x32xf32>, vector<4x32xf32> -> vector<4x32xf32>
    %245 = arith.mulf %244, %227 : vector<4x32xf32>
    %cst_178 = arith.constant dense<0.000000e+00> : vector<32xf32>
    %246 = vector.multi_reduction <add>, %245, %cst_178 [0] : vector<4x32xf32> to vector<32xf32>
    %247 = vector.shape_cast %246 : vector<32xf32> to vector<1x32xf32>
    %c0_179 = arith.constant 0 : index
    %c0_180 = arith.constant 0 : index
    %248 = vector.load %arg29[%c0_179, %c0_180] : memref<2x32xf32, #tpu.memory_space<vmem>>, vector<1x32xf32>
    tpu.vector_store %arg29[%c0_179, %c0_180], %247 {strides = array<i32>} : memref<2x32xf32, #tpu.memory_space<vmem>>, vector<1x32xf32>,
    %249 = vector.extract_strided_slice %210 {offsets = [1, 32], sizes = [1, 32], strides = [1, 1]} : vector<2x96xf32> to vector<1x32xf32>
    %c1_181 = arith.constant 1 : index
    %c3_182 = arith.constant 3 : index
    %c0_183 = arith.constant 0 : index
    %250 = vector.load %arg27[%c1_181, %c3_182, %c0_183] : memref<2x4x32xf32, #tpu.memory_space<vmem>>, vector<1x1x32xf32>
    %251 = vector.shape_cast %250 : vector<1x1x32xf32> to vector<1x32xf32>
    %252 = vector.shape_cast %249 : vector<1x32xf32> to vector<1x1x32xf32>
    tpu.vector_store %arg27[%c1_181, %c3_182, %c0_183], %252 {strides = array<i32>} : memref<2x4x32xf32, #tpu.memory_space<vmem>>, vector<1x1x32xf32>,
    %253 = vector.extract_strided_slice %210 {offsets = [1, 64], sizes = [1, 32], strides = [1, 1]} : vector<2x96xf32> to vector<1x32xf32>
    %c1_184 = arith.constant 1 : index
    %c3_185 = arith.constant 3 : index
    %c0_186 = arith.constant 0 : index
    %254 = vector.load %arg28[%c1_184, %c3_185, %c0_186] : memref<2x4x32xf32, #tpu.memory_space<vmem>>, vector<1x1x32xf32>
    %255 = vector.shape_cast %254 : vector<1x1x32xf32> to vector<1x32xf32>
    %256 = vector.shape_cast %253 : vector<1x32xf32> to vector<1x1x32xf32>
    tpu.vector_store %arg28[%c1_184, %c3_185, %c0_186], %256 {strides = array<i32>} : memref<2x4x32xf32, #tpu.memory_space<vmem>>, vector<1x1x32xf32>,
    %257 = vector.extract_strided_slice %210 {offsets = [1, 0], sizes = [1, 32], strides = [1, 1]} : vector<2x96xf32> to vector<1x32xf32>
    %c1_187 = arith.constant 1 : index
    %c0_188 = arith.constant 0 : index
    %c0_189 = arith.constant 0 : index
    %258 = vector.load %arg27[%c1_187, %c0_188, %c0_189] : memref<2x4x32xf32, #tpu.memory_space<vmem>>, vector<1x4x32xf32>
    %259 = vector.shape_cast %258 : vector<1x4x32xf32> to vector<4x32xf32>
    %c1_190 = arith.constant 1 : index
    %c0_191 = arith.constant 0 : index
    %c0_192 = arith.constant 0 : index
    %260 = vector.load %arg28[%c1_190, %c0_191, %c0_192] : memref<2x4x32xf32, #tpu.memory_space<vmem>>, vector<1x4x32xf32>
    %261 = vector.shape_cast %260 : vector<1x4x32xf32> to vector<4x32xf32>
    %c1_193 = arith.constant 1 : index
    %c0_194 = arith.constant 0 : index
    %c0_195 = arith.constant 0 : index
    %262 = vector.load %arg1[%c1_193, %c0_194, %c0_195] : memref<2x4x4xf32, #tpu.memory_space<vmem>>, vector<1x4x4xf32>
    %263 = vector.shape_cast %262 : vector<1x4x4xf32> to vector<4x4xf32>
    %264 = vector.broadcast %257 : vector<1x32xf32> to vector<4x32xf32>
    %265 = arith.mulf %264, %259 : vector<4x32xf32>
    %cst_196 = arith.constant dense<0.000000e+00> : vector<4x4xf32>
    %266 = tpu.matmul %265, %0, %cst_196 {dimension_numbers = #tpu.dot_dimension_numbers<[1], [0], [0], [1], [0, 0, 1, 1], [], []>} : vector<4x32xf32>, vector<32x4xf32>, vector<4x4xf32> -> vector<4x4xf32>
    %267 = arith.addf %266, %263 : vector<4x4xf32>
    %cst_197 = arith.constant dense<0xFF800000> : vector<4xf32>
    %268 = vector.multi_reduction <maximumf>, %267, %cst_197 [0] : vector<4x4xf32> to vector<4xf32>
    %269 = vector.shape_cast %268 : vector<4xf32> to vector<1x4xf32>
    %270 = vector.broadcast %269 : vector<1x4xf32> to vector<4x4xf32>
    %271 = arith.subf %267, %270 : vector<4x4xf32>
    %272 = math.exp %271 : vector<4x4xf32>
    %cst_198 = arith.constant dense<0.000000e+00> : vector<4xf32>
    %273 = vector.multi_reduction <add>, %272, %cst_198 [0] : vector<4x4xf32> to vector<4xf32>
    %274 = vector.shape_cast %273 : vector<4xf32> to vector<1x4xf32>
    %275 = tpu.reciprocal %274 {approx = true} : vector<1x4xf32> -> vector<1x4xf32>
    %276 = vector.broadcast %275 : vector<1x4xf32> to vector<4x4xf32>
    %277 = arith.mulf %272, %276 : vector<4x4xf32>
    %cst_199 = arith.constant dense<0.000000e+00> : vector<4x32xf32>
    %278 = tpu.matmul %277, %1, %cst_199 {dimension_numbers = #tpu.dot_dimension_numbers<[1], [0], [0], [1], [0, 0, 1, 1], [], []>} : vector<4x4xf32>, vector<4x32xf32>, vector<4x32xf32> -> vector<4x32xf32>
    %279 = arith.mulf %278, %261 : vector<4x32xf32>
    %cst_200 = arith.constant dense<0.000000e+00> : vector<32xf32>
    %280 = vector.multi_reduction <add>, %279, %cst_200 [0] : vector<4x32xf32> to vector<32xf32>
    %281 = vector.shape_cast %280 : vector<32xf32> to vector<1x32xf32>
    %c1_201 = arith.constant 1 : index
    %c0_202 = arith.constant 0 : index
    %282 = vector.load %arg29[%c1_201, %c0_202] : memref<2x32xf32, #tpu.memory_space<vmem>>, vector<1x32xf32>
    tpu.vector_store %arg29[%c1_201, %c0_202], %281 {strides = array<i32>} : memref<2x32xf32, #tpu.memory_space<vmem>>, vector<1x32xf32>,
    %c0_203 = arith.constant 0 : index
    %c0_204 = arith.constant 0 : index
    %283 = vector.load %arg29[%c0_203, %c0_204] : memref<2x32xf32, #tpu.memory_space<vmem>>, vector<2x32xf32>
    %c1_205 = arith.constant 1 : index
    %c0_206 = arith.constant 0 : index
    %c0_207 = arith.constant 0 : index
    %284 = vector.load %arg17[%c1_205, %c0_206, %c0_207] : memref<2x32x32xf32, #tpu.memory_space<vmem>>, vector<1x32x32xf32>
    %285 = vector.shape_cast %284 : vector<1x32x32xf32> to vector<32x32xf32>
    %cst_208 = arith.constant dense<0.000000e+00> : vector<2x32xf32>
    %286 = tpu.matmul %283, %285, %cst_208 {dimension_numbers = #tpu.dot_dimension_numbers<[1], [0], [0], [1], [0, 0, 1, 1], [], []>} : vector<2x32xf32>, vector<32x32xf32>, vector<2x32xf32> -> vector<2x32xf32>
    %287 = arith.addf %193, %286 : vector<2x32xf32>
    %c1_209 = arith.constant 1 : index
    %c0_210 = arith.constant 0 : index
    %c0_211 = arith.constant 0 : index
    %288 = vector.load %arg14[%c1_209, %c0_210, %c0_211] : memref<2x1x32xf32, #tpu.memory_space<vmem>>, vector<1x1x32xf32>
    %289 = vector.shape_cast %288 : vector<1x1x32xf32> to vector<1x32xf32>
    %290 = arith.mulf %287, %287 : vector<2x32xf32>
    %cst_212 = arith.constant dense<0.000000e+00> : vector<2xf32>
    %291 = vector.multi_reduction <add>, %290, %cst_212 [1] : vector<2x32xf32> to vector<2xf32>
    %292 = vector.shape_cast %291 : vector<2xf32> to vector<2x1xf32>
    %cst_213 = arith.constant 3.200000e+01 : f32
    %293 = vector.broadcast %cst_213 : f32 to vector<2x1xf32>
    %294 = arith.divf %292, %293 : vector<2x1xf32>
    %cst_214 = arith.constant 9.99999997E-7 : f32
    %295 = vector.broadcast %cst_214 : f32 to vector<2x1xf32>
    %296 = arith.addf %294, %295 : vector<2x1xf32>
    %297 = math.rsqrt %296 : vector<2x1xf32>
    %298 = vector.broadcast %297 : vector<2x1xf32> to vector<2x32xf32>
    %299 = arith.mulf %287, %298 : vector<2x32xf32>
    %300 = vector.broadcast %289 : vector<1x32xf32> to vector<2x32xf32>
    %301 = arith.mulf %299, %300 : vector<2x32xf32>
    %c1_215 = arith.constant 1 : index
    %c0_216 = arith.constant 0 : index
    %c0_217 = arith.constant 0 : index
    %302 = vector.load %arg18[%c1_215, %c0_216, %c0_217] : memref<2x32x32xf32, #tpu.memory_space<vmem>>, vector<1x32x32xf32>
    %303 = vector.shape_cast %302 : vector<1x32x32xf32> to vector<32x32xf32>
    %cst_218 = arith.constant dense<0.000000e+00> : vector<2x32xf32>
    %304 = tpu.matmul %301, %303, %cst_218 {dimension_numbers = #tpu.dot_dimension_numbers<[1], [0], [0], [1], [0, 0, 1, 1], [], []>} : vector<2x32xf32>, vector<32x32xf32>, vector<2x32xf32> -> vector<2x32xf32>
    %305 = vector.extract_strided_slice %304 {offsets = [0, 0], sizes = [1, 32], strides = [1, 1]} : vector<2x32xf32> to vector<1x32xf32>
    %c0_219 = arith.constant 0 : index
    %c0_220 = arith.constant 0 : index
    %c0_221 = arith.constant 0 : index
    %306 = vector.load %arg11[%c0_219, %c0_220, %c0_221] : memref<2x8x32xf32, #tpu.memory_space<vmem>>, vector<1x8x32xf32>
    %307 = vector.shape_cast %306 : vector<1x8x32xf32> to vector<8x32xf32>
    %c0_222 = arith.constant 0 : index
    %c0_223 = arith.constant 0 : index
    %c0_224 = arith.constant 0 : index
    %308 = vector.load %arg12[%c0_222, %c0_223, %c0_224] : memref<2x8x32xf32, #tpu.memory_space<vmem>>, vector<1x8x32xf32>
    %309 = vector.shape_cast %308 : vector<1x8x32xf32> to vector<8x32xf32>
    %c0_225 = arith.constant 0 : index
    %c0_226 = arith.constant 0 : index
    %c0_227 = arith.constant 0 : index
    %310 = vector.load %arg2[%c0_225, %c0_226, %c0_227] : memref<2x8x4xf32, #tpu.memory_space<vmem>>, vector<1x8x4xf32>
    %311 = vector.shape_cast %310 : vector<1x8x4xf32> to vector<8x4xf32>
    %312 = vector.broadcast %305 : vector<1x32xf32> to vector<8x32xf32>
    %313 = arith.mulf %312, %307 : vector<8x32xf32>
    %cst_228 = arith.constant dense<0.000000e+00> : vector<8x4xf32>
    %314 = tpu.matmul %313, %0, %cst_228 {dimension_numbers = #tpu.dot_dimension_numbers<[1], [0], [0], [1], [0, 0, 1, 1], [], []>} : vector<8x32xf32>, vector<32x4xf32>, vector<8x4xf32> -> vector<8x4xf32>
    %315 = arith.addf %314, %311 : vector<8x4xf32>
    %cst_229 = arith.constant dense<0xFF800000> : vector<4xf32>
    %316 = vector.multi_reduction <maximumf>, %315, %cst_229 [0] : vector<8x4xf32> to vector<4xf32>
    %317 = vector.shape_cast %316 : vector<4xf32> to vector<1x4xf32>
    %318 = vector.broadcast %317 : vector<1x4xf32> to vector<8x4xf32>
    %319 = arith.subf %315, %318 : vector<8x4xf32>
    %320 = math.exp %319 : vector<8x4xf32>
    %cst_230 = arith.constant dense<0.000000e+00> : vector<4xf32>
    %321 = vector.multi_reduction <add>, %320, %cst_230 [0] : vector<8x4xf32> to vector<4xf32>
    %322 = vector.shape_cast %321 : vector<4xf32> to vector<1x4xf32>
    %323 = tpu.reciprocal %322 {approx = true} : vector<1x4xf32> -> vector<1x4xf32>
    %324 = vector.broadcast %323 : vector<1x4xf32> to vector<8x4xf32>
    %325 = arith.mulf %320, %324 : vector<8x4xf32>
    %cst_231 = arith.constant dense<0.000000e+00> : vector<8x32xf32>
    %326 = tpu.matmul %325, %1, %cst_231 {dimension_numbers = #tpu.dot_dimension_numbers<[1], [0], [0], [1], [0, 0, 1, 1], [], []>} : vector<8x4xf32>, vector<4x32xf32>, vector<8x32xf32> -> vector<8x32xf32>
    %327 = arith.mulf %326, %309 : vector<8x32xf32>
    %cst_232 = arith.constant dense<0.000000e+00> : vector<32xf32>
    %328 = vector.multi_reduction <add>, %327, %cst_232 [0] : vector<8x32xf32> to vector<32xf32>
    %329 = vector.shape_cast %328 : vector<32xf32> to vector<1x32xf32>
    %c0_233 = arith.constant 0 : index
    %c0_234 = arith.constant 0 : index
    %330 = vector.load %arg29[%c0_233, %c0_234] : memref<2x32xf32, #tpu.memory_space<vmem>>, vector<1x32xf32>
    tpu.vector_store %arg29[%c0_233, %c0_234], %329 {strides = array<i32>} : memref<2x32xf32, #tpu.memory_space<vmem>>, vector<1x32xf32>,
    %331 = vector.extract_strided_slice %304 {offsets = [1, 0], sizes = [1, 32], strides = [1, 1]} : vector<2x32xf32> to vector<1x32xf32>
    %c1_235 = arith.constant 1 : index
    %c0_236 = arith.constant 0 : index
    %c0_237 = arith.constant 0 : index
    %332 = vector.load %arg11[%c1_235, %c0_236, %c0_237] : memref<2x8x32xf32, #tpu.memory_space<vmem>>, vector<1x8x32xf32>
    %333 = vector.shape_cast %332 : vector<1x8x32xf32> to vector<8x32xf32>
    %c1_238 = arith.constant 1 : index
    %c0_239 = arith.constant 0 : index
    %c0_240 = arith.constant 0 : index
    %334 = vector.load %arg12[%c1_238, %c0_239, %c0_240] : memref<2x8x32xf32, #tpu.memory_space<vmem>>, vector<1x8x32xf32>
    %335 = vector.shape_cast %334 : vector<1x8x32xf32> to vector<8x32xf32>
    %c1_241 = arith.constant 1 : index
    %c0_242 = arith.constant 0 : index
    %c0_243 = arith.constant 0 : index
    %336 = vector.load %arg2[%c1_241, %c0_242, %c0_243] : memref<2x8x4xf32, #tpu.memory_space<vmem>>, vector<1x8x4xf32>
    %337 = vector.shape_cast %336 : vector<1x8x4xf32> to vector<8x4xf32>
    %338 = vector.broadcast %331 : vector<1x32xf32> to vector<8x32xf32>
    %339 = arith.mulf %338, %333 : vector<8x32xf32>
    %cst_244 = arith.constant dense<0.000000e+00> : vector<8x4xf32>
    %340 = tpu.matmul %339, %0, %cst_244 {dimension_numbers = #tpu.dot_dimension_numbers<[1], [0], [0], [1], [0, 0, 1, 1], [], []>} : vector<8x32xf32>, vector<32x4xf32>, vector<8x4xf32> -> vector<8x4xf32>
    %341 = arith.addf %340, %337 : vector<8x4xf32>
    %cst_245 = arith.constant dense<0xFF800000> : vector<4xf32>
    %342 = vector.multi_reduction <maximumf>, %341, %cst_245 [0] : vector<8x4xf32> to vector<4xf32>
    %343 = vector.shape_cast %342 : vector<4xf32> to vector<1x4xf32>
    %344 = vector.broadcast %343 : vector<1x4xf32> to vector<8x4xf32>
    %345 = arith.subf %341, %344 : vector<8x4xf32>
    %346 = math.exp %345 : vector<8x4xf32>
    %cst_246 = arith.constant dense<0.000000e+00> : vector<4xf32>
    %347 = vector.multi_reduction <add>, %346, %cst_246 [0] : vector<8x4xf32> to vector<4xf32>
    %348 = vector.shape_cast %347 : vector<4xf32> to vector<1x4xf32>
    %349 = tpu.reciprocal %348 {approx = true} : vector<1x4xf32> -> vector<1x4xf32>
    %350 = vector.broadcast %349 : vector<1x4xf32> to vector<8x4xf32>
    %351 = arith.mulf %346, %350 : vector<8x4xf32>
    %cst_247 = arith.constant dense<0.000000e+00> : vector<8x32xf32>
    %352 = tpu.matmul %351, %1, %cst_247 {dimension_numbers = #tpu.dot_dimension_numbers<[1], [0], [0], [1], [0, 0, 1, 1], [], []>} : vector<8x4xf32>, vector<4x32xf32>, vector<8x32xf32> -> vector<8x32xf32>
    %353 = arith.mulf %352, %335 : vector<8x32xf32>
    %cst_248 = arith.constant dense<0.000000e+00> : vector<32xf32>
    %354 = vector.multi_reduction <add>, %353, %cst_248 [0] : vector<8x32xf32> to vector<32xf32>
    %355 = vector.shape_cast %354 : vector<32xf32> to vector<1x32xf32>
    %c1_249 = arith.constant 1 : index
    %c0_250 = arith.constant 0 : index
    %356 = vector.load %arg29[%c1_249, %c0_250] : memref<2x32xf32, #tpu.memory_space<vmem>>, vector<1x32xf32>
    tpu.vector_store %arg29[%c1_249, %c0_250], %355 {strides = array<i32>} : memref<2x32xf32, #tpu.memory_space<vmem>>, vector<1x32xf32>,
    %c0_251 = arith.constant 0 : index
    %c0_252 = arith.constant 0 : index
    %357 = vector.load %arg29[%c0_251, %c0_252] : memref<2x32xf32, #tpu.memory_space<vmem>>, vector<2x32xf32>
    %c1_253 = arith.constant 1 : index
    %c0_254 = arith.constant 0 : index
    %c0_255 = arith.constant 0 : index
    %358 = vector.load %arg19[%c1_253, %c0_254, %c0_255] : memref<2x32x32xf32, #tpu.memory_space<vmem>>, vector<1x32x32xf32>
    %359 = vector.shape_cast %358 : vector<1x32x32xf32> to vector<32x32xf32>
    %cst_256 = arith.constant dense<0.000000e+00> : vector<2x32xf32>
    %360 = tpu.matmul %357, %359, %cst_256 {dimension_numbers = #tpu.dot_dimension_numbers<[1], [0], [0], [1], [0, 0, 1, 1], [], []>} : vector<2x32xf32>, vector<32x32xf32>, vector<2x32xf32> -> vector<2x32xf32>
    %361 = arith.addf %287, %360 : vector<2x32xf32>
    %c1_257 = arith.constant 1 : index
    %c0_258 = arith.constant 0 : index
    %c0_259 = arith.constant 0 : index
    %362 = vector.load %arg15[%c1_257, %c0_258, %c0_259] : memref<2x1x32xf32, #tpu.memory_space<vmem>>, vector<1x1x32xf32>
    %363 = vector.shape_cast %362 : vector<1x1x32xf32> to vector<1x32xf32>
    %364 = arith.mulf %361, %361 : vector<2x32xf32>
    %cst_260 = arith.constant dense<0.000000e+00> : vector<2xf32>
    %365 = vector.multi_reduction <add>, %364, %cst_260 [1] : vector<2x32xf32> to vector<2xf32>
    %366 = vector.shape_cast %365 : vector<2xf32> to vector<2x1xf32>
    %cst_261 = arith.constant 3.200000e+01 : f32
    %367 = vector.broadcast %cst_261 : f32 to vector<2x1xf32>
    %368 = arith.divf %366, %367 : vector<2x1xf32>
    %cst_262 = arith.constant 9.99999997E-7 : f32
    %369 = vector.broadcast %cst_262 : f32 to vector<2x1xf32>
    %370 = arith.addf %368, %369 : vector<2x1xf32>
    %371 = math.rsqrt %370 : vector<2x1xf32>
    %372 = vector.broadcast %371 : vector<2x1xf32> to vector<2x32xf32>
    %373 = arith.mulf %361, %372 : vector<2x32xf32>
    %374 = vector.broadcast %363 : vector<1x32xf32> to vector<2x32xf32>
    %375 = arith.mulf %373, %374 : vector<2x32xf32>
    %c1_263 = arith.constant 1 : index
    %c0_264 = arith.constant 0 : index
    %c0_265 = arith.constant 0 : index
    %376 = vector.load %arg20[%c1_263, %c0_264, %c0_265] : memref<2x32x64xf32, #tpu.memory_space<vmem>>, vector<1x32x64xf32>
    %377 = vector.shape_cast %376 : vector<1x32x64xf32> to vector<32x64xf32>
    %cst_266 = arith.constant dense<0.000000e+00> : vector<2x64xf32>
    %378 = tpu.matmul %375, %377, %cst_266 {dimension_numbers = #tpu.dot_dimension_numbers<[1], [0], [0], [1], [0, 0, 1, 1], [], []>} : vector<2x32xf32>, vector<32x64xf32>, vector<2x64xf32> -> vector<2x64xf32>
    %cst_267 = arith.constant 0.000000e+00 : f32
    %379 = vector.broadcast %cst_267 : f32 to vector<2x64xf32>
    %380 = arith.maximumf %378, %379 : vector<2x64xf32>
    %c1_268 = arith.constant 1 : index
    %c0_269 = arith.constant 0 : index
    %c0_270 = arith.constant 0 : index
    %381 = vector.load %arg21[%c1_268, %c0_269, %c0_270] : memref<2x64x32xf32, #tpu.memory_space<vmem>>, vector<1x64x32xf32>
    %382 = vector.shape_cast %381 : vector<1x64x32xf32> to vector<64x32xf32>
    %cst_271 = arith.constant dense<0.000000e+00> : vector<2x32xf32>
    %383 = tpu.matmul %380, %382, %cst_271 {dimension_numbers = #tpu.dot_dimension_numbers<[1], [0], [0], [1], [0, 0, 1, 1], [], []>} : vector<2x64xf32>, vector<64x32xf32>, vector<2x32xf32> -> vector<2x32xf32>
    %384 = arith.addf %361, %383 : vector<2x32xf32>
    %c0_272 = arith.constant 0 : index
    %c0_273 = arith.constant 0 : index
    %385 = vector.load %arg22[%c0_272, %c0_273] : memref<1x32xf32, #tpu.memory_space<vmem>>, vector<1x32xf32>
    %386 = arith.mulf %384, %384 : vector<2x32xf32>
    %cst_274 = arith.constant dense<0.000000e+00> : vector<2xf32>
    %387 = vector.multi_reduction <add>, %386, %cst_274 [1] : vector<2x32xf32> to vector<2xf32>
    %388 = vector.shape_cast %387 : vector<2xf32> to vector<2x1xf32>
    %cst_275 = arith.constant 3.200000e+01 : f32
    %389 = vector.broadcast %cst_275 : f32 to vector<2x1xf32>
    %390 = arith.divf %388, %389 : vector<2x1xf32>
    %cst_276 = arith.constant 9.99999997E-7 : f32
    %391 = vector.broadcast %cst_276 : f32 to vector<2x1xf32>
    %392 = arith.addf %390, %391 : vector<2x1xf32>
    %393 = math.rsqrt %392 : vector<2x1xf32>
    %394 = vector.broadcast %393 : vector<2x1xf32> to vector<2x32xf32>
    %395 = arith.mulf %384, %394 : vector<2x32xf32>
    %396 = vector.broadcast %385 : vector<1x32xf32> to vector<2x32xf32>
    %397 = arith.mulf %395, %396 : vector<2x32xf32>
    %c0_277 = arith.constant 0 : index
    %c0_278 = arith.constant 0 : index
    %398 = vector.load %arg23[%c0_277, %c0_278] : memref<32x128xf32, #tpu.memory_space<vmem>>, vector<32x128xf32>
    %cst_279 = arith.constant dense<0.000000e+00> : vector<2x128xf32>
    %399 = tpu.matmul %397, %398, %cst_279 {dimension_numbers = #tpu.dot_dimension_numbers<[1], [0], [0], [1], [0, 0, 1, 1], [], []>} : vector<2x32xf32>, vector<32x128xf32>, vector<2x128xf32> -> vector<2x128xf32>
    %c0_280 = arith.constant 0 : index
    %c0_281 = arith.constant 0 : index
    %400 = vector.load %arg24[%c0_280, %c0_281] : memref<2x128xf32, #tpu.memory_space<vmem>>, vector<2x128xf32>
    tpu.vector_store %arg24[%c0_280, %c0_281], %399 {strides = array<i32>} : memref<2x128xf32, #tpu.memory_space<vmem>>, vector<2x128xf32>,
    return
  }
}

</mosaic_0001>

<llo_original>
// kernel: t5_decoder_forward.1
$region0: #{t5_decoder_forward.1}
  #allocation0 [shape = 'u32[]', space=smem, size = 0x4, offset = 0x4, fixed_abs, tag = 'smem constant byte address 0x4 - core index']
  #allocation1 [shape = 'u32[72,128]{1,0:T(1,128)}', space=vmem, size = 0x9000, scoped, tag = 'internal scratch']
  #allocation2 [shape = 'f32[2,32]{1,0:T(2,128)}', space=vmem, size = 0x400, scoped, tag = 'scratch operand']
  %s0 = inlined_call_operand.vmem [shape: f32[2,32], index: 0, kind: input, shape index: {}]
  %s1 = inlined_call_operand.vmem [shape: f32[2,4,4], index: 1, kind: input, shape index: {}]
  %s2 = inlined_call_operand.vmem [shape: f32[2,8,4], index: 2, kind: input, shape index: {}]
  %s3 = inlined_call_operand.vmem [shape: f32[32,4], index: 3, kind: input, shape index: {}]
  %s4 = inlined_call_operand.vmem [shape: f32[4,32], index: 4, kind: input, shape index: {}]
  %s5 = inlined_call_operand.vmem [shape: f32[2,3,32], index: 5, kind: input, shape index: {}]
  %s6 = inlined_call_operand.vmem [shape: f32[2,3,32], index: 6, kind: input, shape index: {}]
  %s7 = inlined_call_operand.vmem [shape: f32[2,8,32], index: 7, kind: input, shape index: {}]
  %s8 = inlined_call_operand.vmem [shape: f32[2,8,32], index: 8, kind: input, shape index: {}]
  %s9 = inlined_call_operand.vmem [shape: f32[2,3,32], index: 9, kind: input, shape index: {}]
  %s10 = inlined_call_operand.vmem [shape: f32[2,3,32], index: 10, kind: input, shape index: {}]
  %s11 = inlined_call_operand.vmem [shape: f32[2,8,32], index: 11, kind: input, shape index: {}]
  %s12 = inlined_call_operand.vmem [shape: f32[2,8,32], index: 12, kind: input, shape index: {}]
  %s13 = inlined_call_operand.vmem [shape: f32[2,1,32], index: 13, kind: input, shape index: {}]
  %s14 = inlined_call_operand.vmem [shape: f32[2,1,32], index: 14, kind: input, shape index: {}]
  %s15 = inlined_call_operand.vmem [shape: f32[2,1,32], index: 15, kind: input, shape index: {}]
  %s16 = inlined_call_operand.vmem [shape: f32[2,32,96], index: 16, kind: input, shape index: {}]
  %s17 = inlined_call_operand.vmem [shape: f32[2,32,32], index: 17, kind: input, shape index: {}]
  %s18 = inlined_call_operand.vmem [shape: f32[2,32,32], index: 18, kind: input, shape index: {}]
  %s19 = inlined_call_operand.vmem [shape: f32[2,32,32], index: 19, kind: input, shape index: {}]
  %s20 = inlined_call_operand.vmem [shape: f32[2,32,64], index: 20, kind: input, shape index: {}]
  %s21 = inlined_call_operand.vmem [shape: f32[2,64,32], index: 21, kind: input, shape index: {}]
  %s22 = inlined_call_operand.vmem [shape: f32[1,32], index: 22, kind: input, shape index: {}]
  %s23 = inlined_call_operand.vmem [shape: f32[32,128], index: 23, kind: input, shape index: {}]
  %s24 = inlined_call_operand.hbm [shape: f32[2,128], index: 24, kind: output, shape index: {0}]
  %s25 = inlined_call_operand.vmem [shape: f32[2,4,32], index: 25, kind: output, shape index: {1}]
  %s26 = inlined_call_operand.vmem [shape: f32[2,4,32], index: 26, kind: output, shape index: {2}]
  %s27 = inlined_call_operand.vmem [shape: f32[2,4,32], index: 27, kind: output, shape index: {3}]
  %s28 = inlined_call_operand.vmem [shape: f32[2,4,32], index: 28, kind: output, shape index: {4}]
  %29 = xla_tuple %s24, %s25, %s26, %s27, %s28
  %s30 = sld [smem:[#allocation0]]
  $region138: #{t5_decoder_forward.1} parent=0
    _
  %s32 = ssub.s32 1, %s30
  %s33 = scalar_select 0, %s32, %s30
  $region1: #{t5_decoder_forward.1} parent=0
    #allocation3 [shape = 'u8[1024]{0}', space=vmem, size = 0x400, scoped, tag = 'output window, operand 0, single buffered']
    #allocation4 [shape = 's32[1]{0}', space=sflag, size = 0x4, scoped, tag = 'scoped memory for t5_decoder_forward.1']
    %34 = vsyncpa [#allocation4], 0
    // Predicated region
    $region2: #{t5_decoder_forward.1} parent=1 // pred_check
      _
    $region3: #{t5_decoder_forward.1} parent=1 // pred_check_branch
      %36 = sbr.rel (0) target = $region5
    $region4: #{t5_decoder_forward.1} parent=1 // pred_region
      _
    $region5: #{t5_decoder_forward.1} parent=1 // pred_fallthru
      _
    // Predicated region
    $region6: #{t5_decoder_forward.1} parent=1 // pred_check
      _
    $region7: #{t5_decoder_forward.1} parent=1 // pred_check_branch
      %38 = sbr.rel (0) target = $region9
    $region8: #{t5_decoder_forward.1} parent=1 // pred_region
      _
    $region9: #{t5_decoder_forward.1} parent=1 // pred_fallthru
      _
    // Predicated region
    $region10: #{t5_decoder_forward.1} parent=1 // pred_check
      _
    $region11: #{t5_decoder_forward.1} parent=1 // pred_check_branch
      %40 = sbr.rel (0) target = $region13
    $region12: #{t5_decoder_forward.1} parent=1 // pred_region
      _
    $region13: #{t5_decoder_forward.1} parent=1 // pred_fallthru
      _
    // Predicated region
    $region14: #{t5_decoder_forward.1} parent=1 // pred_check
      _
    $region15: #{t5_decoder_forward.1} parent=1 // pred_check_branch
      %42 = sbr.rel (0) target = $region17
    $region16: #{t5_decoder_forward.1} parent=1 // pred_region
      _
    $region17: #{t5_decoder_forward.1} parent=1 // pred_fallthru
      _
    // Predicated region
    $region18: #{t5_decoder_forward.1} parent=1 // pred_check
      _
    $region19: #{t5_decoder_forward.1} parent=1 // pred_check_branch
      %44 = sbr.rel (0) target = $region21
    $region20: #{t5_decoder_forward.1} parent=1 // pred_region
      _
    $region21: #{t5_decoder_forward.1} parent=1 // pred_fallthru
      _
    // Predicated region
    $region22: #{t5_decoder_forward.1} parent=1 // pred_check
      _
    $region23: #{t5_decoder_forward.1} parent=1 // pred_check_branch
      %46 = sbr.rel (0) target = $region25
    $region24: #{t5_decoder_forward.1} parent=1 // pred_region
      _
    $region25: #{t5_decoder_forward.1} parent=1 // pred_fallthru
      _
    // Predicated region
    $region26: #{t5_decoder_forward.1} parent=1 // pred_check
      _
    $region27: #{t5_decoder_forward.1} parent=1 // pred_check_branch
      %48 = sbr.rel (0) target = $region29
    $region28: #{t5_decoder_forward.1} parent=1 // pred_region
      _
    $region29: #{t5_decoder_forward.1} parent=1 // pred_fallthru
      _
    // Predicated region
    $region30: #{t5_decoder_forward.1} parent=1 // pred_check
      _
    $region31: #{t5_decoder_forward.1} parent=1 // pred_check_branch
      %50 = sbr.rel (0) target = $region33
    $region32: #{t5_decoder_forward.1} parent=1 // pred_region
      _
    $region33: #{t5_decoder_forward.1} parent=1 // pred_fallthru
      _
    // Predicated region
    $region34: #{t5_decoder_forward.1} parent=1 // pred_check
      _
    $region35: #{t5_decoder_forward.1} parent=1 // pred_check_branch
      %52 = sbr.rel (0) target = $region37
    $region36: #{t5_decoder_forward.1} parent=1 // pred_region
      _
    $region37: #{t5_decoder_forward.1} parent=1 // pred_fallthru
      _
    // Predicated region
    $region38: #{t5_decoder_forward.1} parent=1 // pred_check
      _
    $region39: #{t5_decoder_forward.1} parent=1 // pred_check_branch
      %54 = sbr.rel (0) target = $region41
    $region40: #{t5_decoder_forward.1} parent=1 // pred_region
      _
    $region41: #{t5_decoder_forward.1} parent=1 // pred_fallthru
      _
    // Predicated region
    $region42: #{t5_decoder_forward.1} parent=1 // pred_check
      _
    $region43: #{t5_decoder_forward.1} parent=1 // pred_check_branch
      %56 = sbr.rel (0) target = $region45
    $region44: #{t5_decoder_forward.1} parent=1 // pred_region
      _
    $region45: #{t5_decoder_forward.1} parent=1 // pred_fallthru
      _
    // Predicated region
    $region46: #{t5_decoder_forward.1} parent=1 // pred_check
      _
    $region47: #{t5_decoder_forward.1} parent=1 // pred_check_branch
      %58 = sbr.rel (0) target = $region49
    $region48: #{t5_decoder_forward.1} parent=1 // pred_region
      _
    $region49: #{t5_decoder_forward.1} parent=1 // pred_fallthru
      _
    // Predicated region
    $region50: #{t5_decoder_forward.1} parent=1 // pred_check
      _
    $region51: #{t5_decoder_forward.1} parent=1 // pred_check_branch
      %60 = sbr.rel (0) target = $region53
    $region52: #{t5_decoder_forward.1} parent=1 // pred_region
      _
    $region53: #{t5_decoder_forward.1} parent=1 // pred_fallthru
      _
    // Predicated region
    $region54: #{t5_decoder_forward.1} parent=1 // pred_check
      _
    $region55: #{t5_decoder_forward.1} parent=1 // pred_check_branch
      %62 = sbr.rel (0) target = $region57
    $region56: #{t5_decoder_forward.1} parent=1 // pred_region
      _
    $region57: #{t5_decoder_forward.1} parent=1 // pred_fallthru
      _
    // Predicated region
    $region58: #{t5_decoder_forward.1} parent=1 // pred_check
      _
    $region59: #{t5_decoder_forward.1} parent=1 // pred_check_branch
      %64 = sbr.rel (0) target = $region61
    $region60: #{t5_decoder_forward.1} parent=1 // pred_region
      _
    $region61: #{t5_decoder_forward.1} parent=1 // pred_fallthru
      _
    // Predicated region
    $region62: #{t5_decoder_forward.1} parent=1 // pred_check
      _
    $region63: #{t5_decoder_forward.1} parent=1 // pred_check_branch
      %66 = sbr.rel (0) target = $region65
    $region64: #{t5_decoder_forward.1} parent=1 // pred_region
      _
    $region65: #{t5_decoder_forward.1} parent=1 // pred_fallthru
      _
    // Predicated region
    $region66: #{t5_decoder_forward.1} parent=1 // pred_check
      _
    $region67: #{t5_decoder_forward.1} parent=1 // pred_check_branch
      %68 = sbr.rel (0) target = $region69
    $region68: #{t5_decoder_forward.1} parent=1 // pred_region
      _
    $region69: #{t5_decoder_forward.1} parent=1 // pred_fallthru
      _
    // Predicated region
    $region70: #{t5_decoder_forward.1} parent=1 // pred_check
      _
    $region71: #{t5_decoder_forward.1} parent=1 // pred_check_branch
      %70 = sbr.rel (0) target = $region73
    $region72: #{t5_decoder_forward.1} parent=1 // pred_region
      _
    $region73: #{t5_decoder_forward.1} parent=1 // pred_fallthru
      _
    // Predicated region
    $region74: #{t5_decoder_forward.1} parent=1 // pred_check
      _
    $region75: #{t5_decoder_forward.1} parent=1 // pred_check_branch
      %72 = sbr.rel (0) target = $region77
    $region76: #{t5_decoder_forward.1} parent=1 // pred_region
      _
    $region77: #{t5_decoder_forward.1} parent=1 // pred_fallthru
      _
    // Predicated region
    $region78: #{t5_decoder_forward.1} parent=1 // pred_check
      _
    $region79: #{t5_decoder_forward.1} parent=1 // pred_check_branch
      %74 = sbr.rel (0) target = $region81
    $region80: #{t5_decoder_forward.1} parent=1 // pred_region
      _
    $region81: #{t5_decoder_forward.1} parent=1 // pred_fallthru
      _
    // Predicated region
    $region82: #{t5_decoder_forward.1} parent=1 // pred_check
      _
    $region83: #{t5_decoder_forward.1} parent=1 // pred_check_branch
      %76 = sbr.rel (0) target = $region85
    $region84: #{t5_decoder_forward.1} parent=1 // pred_region
      _
    $region85: #{t5_decoder_forward.1} parent=1 // pred_fallthru
      _
    // Predicated region
    $region86: #{t5_decoder_forward.1} parent=1 // pred_check
      _
    $region87: #{t5_decoder_forward.1} parent=1 // pred_check_branch
      %78 = sbr.rel (0) target = $region89
    $region88: #{t5_decoder_forward.1} parent=1 // pred_region
      _
    $region89: #{t5_decoder_forward.1} parent=1 // pred_fallthru
      _
    // Predicated region
    $region90: #{t5_decoder_forward.1} parent=1 // pred_check
      _
    $region91: #{t5_decoder_forward.1} parent=1 // pred_check_branch
      %80 = sbr.rel (0) target = $region93
    $region92: #{t5_decoder_forward.1} parent=1 // pred_region
      _
    $region93: #{t5_decoder_forward.1} parent=1 // pred_fallthru
      _
    // Predicated region
    $region94: #{t5_decoder_forward.1} parent=1 // pred_check
      _
    $region95: #{t5_decoder_forward.1} parent=1 // pred_check_branch
      %82 = sbr.rel (0) target = $region97
    $region96: #{t5_decoder_forward.1} parent=1 // pred_region
      _
    $region97: #{t5_decoder_forward.1} parent=1 // pred_fallthru
      _
    %v83 = vld [vmem:[%s3] sm:$0xff]
    %v84 = vld [vmem:[%s3 + $0x8] sm:$0xff]
    %v85 = vld [vmem:[%s3 + $0x10] sm:$0xff]
    %v86 = vld [vmem:[%s3 + $0x18] sm:$0xff]
    %v87 = vld [vmem:[%s4] sm:$0xf]
    %v88 = vld [vmem:[%s0] sm:$0x3]
    %v89 = vld [vmem:[%s13] sm:$0x1]
    %v90 = vmul.f32 %v88, %v88
    %vm91 = vcmask 254976
    %v92 = vsel %vm91, %v90, 0.0
    %93 = vadd.xlane.f32.xlu0 %v92
    %v94 = vpop.xlane.xlu0 %93
    %v95 = vrcp.pop 32.0
    %v96 = vmul.f32 32.0, %v95
    %v97 = vsub.f32 1.0, %v96
    %v98 = vmul.f32 %v95, %v97
    %v99 = vadd.f32 %v95, %v98
    %vm100 = vweird.f32 %v95
    %v101 = vsel %vm100, %v95, %v99
    %v102 = vmul.f32 %v94, %v101
    %v103 = vadd.f32 %v102, 1e-06
    %v104 = vrsqrt.pop %v103
    %v105 = vmul.f32 %v104, %v103
    %v106 = vmul.f32 %v105, %v104
    %v107 = vmul.f32 0.5, %v106
    %v108 = vsub.f32 1.5, %v107
    %v109 = vmul.f32 %v104, %v108
    %vm110 = vweird.f32 %v103
    %vm111 = vweird.f32 %v104
    %vm112 = vmor %vm110, %vm111
    %v113 = vsel %vm112, %v104, %v109
    %v114 = vmul.f32 %v88, %v113
    %v116 = vperm.slane %v89, 0
    %v118 = vmul.f32 %v114, %v116
    %v119 = vld [vmem:[%s16] sm:$0xff]
    %v120 = vld [vmem:[%s16 + $0x8] sm:$0xff]
    %v121 = vld [vmem:[%s16 + $0x10] sm:$0xff]
    %v122 = vld [vmem:[%s16 + $0x18] sm:$0xff]
    %vm123 = vcmask 261120
    %v125 = vsel %vm123, %v118, 0
    %127 = vmatpush.msra.mxu0 0.0
    %128 = vmatpush.msra.mxu0 0.0
    %129 = vmatpush.msra.mxu0 0.0
    %130 = vmatpush.msra.mxu0 0.0
    %131 = vmatpush.msra.mxu0 0.0
    %132 = vmatpush.msra.mxu0 0.0
    %133 = vmatpush.msra.mxu0 0.0
    %134 = vmatpush.msra.mxu0 0.0
    %135 = vmatpush.msra.mxu0 0.0
    %136 = vmatpush.msra.mxu0 0.0
    %137 = vmatpush.msra.mxu0 0.0
    %138 = vmatpush.msra.mxu0 0.0
    %139 = vmatpush.msra.mxu0 %v122
    %140 = vmatpush.msra.mxu0 %v121
    %141 = vmatpush.msra.mxu0 %v120
    %142 = vmatpush.msra.mxu0 %v119
    %143 = vmatmul.f32.gmra.mxu0 %v125
    %v144 = vpop.f32.mrf.mxu0
    %v145 = vadd.f32 0.0, %v144
    %146 = vdwg.mxu0
    %v147 = vld [vmem:[%s5] sm:$0x7]
    %v148 = vld [vmem:[%s5 + $0x4] sm:$0x7]
    %vm149 = vcmask 256000
    %150 = vst.msk [vmem:[%s25] sm:$0x7] %vm149, %v147
    %151 = vst.msk [vmem:[%s25 + $0x4] sm:$0x7] %vm149, %v148
    %v152 = vld [vmem:[%s6] sm:$0x7]
    %v153 = vld [vmem:[%s6 + $0x4] sm:$0x7]
    %154 = vst.msk [vmem:[%s26] sm:$0x7] %vm149, %v152
    %155 = vst.msk [vmem:[%s26 + $0x4] sm:$0x7] %vm149, %v153
    %157 = vrot.lane.b32.xlu0 %v145, 96
    %v158 = vpop.permute.xlu0 %157
    %vm160 = vcmask 253952
    %161 = vst.msk [vmem:[%s25 + $0x3] sm:$0x1] %vm160, %v158
    %162 = vrot.lane.b32.xlu0 %v145, 64
    %v163 = vpop.permute.xlu0 %162
    %165 = vst.msk [vmem:[%s26 + $0x3] sm:$0x1] %vm160, %v163
    %v166 = vld [vmem:[%s25] sm:$0xf]
    %v167 = vld [vmem:[%s26] sm:$0xf]
    %v168 = vld [vmem:[%s1] sm:$0xf]
    %v169 = vperm.slane %v145, 0
    %v170 = vmul.f32 %v169, %v166
    %v172 = vsel %vm123, %v170, 0
    %174 = vmatpush.msra.mxu0 0.0
    %175 = vmatpush.msra.mxu0 0.0
    %176 = vmatpush.msra.mxu0 0.0
    %177 = vmatpush.msra.mxu0 0.0
    %178 = vmatpush.msra.mxu0 0.0
    %179 = vmatpush.msra.mxu0 0.0
    %180 = vmatpush.msra.mxu0 0.0
    %181 = vmatpush.msra.mxu0 0.0
    %182 = vmatpush.msra.mxu0 0.0
    %183 = vmatpush.msra.mxu0 0.0
    %184 = vmatpush.msra.mxu0 0.0
    %185 = vmatpush.msra.mxu0 0.0
    %186 = vmatpush.msra.mxu0 %v86
    %187 = vmatpush.msra.mxu0 %v85
    %188 = vmatpush.msra.mxu0 %v84
    %189 = vmatpush.msra.mxu0 %v83
    %190 = vmatmul.f32.gmra.mxu0 %v172
    %v191 = vpop.f32.mrf.mxu0
    %v192 = vadd.f32 %v168, %v191
    %193 = vdwg.mxu0
    %vm194 = vcmask 27648
    %v195 = vsel %vm194, %v192, -inf
    %v196 = vrot.slane %v195, 4
    %v197 = vmax.f32 %v195, %v196
    %v198 = vrot.slane %v197, 2
    %v199 = vmax.f32 %v197, %v198
    %v200 = vrot.slane %v199, 1
    %v201 = vmax.f32 %v199, %v200
    %v202 = vsub.f32 %v192, %v201
    %v203 = vmul.f32 %v202, 1.442695
    %v204 = vpow.pop %v203
    %v205 = vsel %vm194, %v204, 0.0
    %v206 = vrot.slane %v205, 4
    %v207 = vadd.f32 %v205, %v206
    %v208 = vrot.slane %v207, 2
    %v209 = vadd.f32 %v207, %v208
    %v210 = vrot.slane %v209, 1
    %v211 = vadd.f32 %v209, %v210
    %v212 = vrcp.pop %v211
    %v213 = vmul.f32 %v204, %v212
    %vm214 = vcmask 31744
    %v216 = vsel %vm214, %v213, 0
    %vm218 = vcmask 1043456
    %v220 = vsel %vm218, %v87, 0
    %222 = vmatpush.msra.mxu0 0.0
    %223 = vmatpush.msra.mxu0 0.0
    %224 = vmatpush.msra.mxu0 0.0
    %225 = vmatpush.msra.mxu0 0.0
    %226 = vmatpush.msra.mxu0 0.0
    %227 = vmatpush.msra.mxu0 0.0
    %228 = vmatpush.msra.mxu0 0.0
    %229 = vmatpush.msra.mxu0 0.0
    %230 = vmatpush.msra.mxu0 0.0
    %231 = vmatpush.msra.mxu0 0.0
    %232 = vmatpush.msra.mxu0 0.0
    %233 = vmatpush.msra.mxu0 0.0
    %234 = vmatpush.msra.mxu0 0.0
    %235 = vmatpush.msra.mxu0 0.0
    %236 = vmatpush.msra.mxu0 0.0
    %237 = vmatpush.msra.mxu0 %v220
    %238 = vmatmul.f32.gmra.mxu0 %v216
    %v239 = vpop.f32.mrf.mxu0
    %v240 = vadd.f32 0.0, %v239
    %241 = vdwg.mxu0
    %v242 = vmul.f32 %v240, %v167
    %vm243 = vcmask 257024
    %v244 = vsel %vm243, %v242, 0.0
    %v245 = vrot.slane %v244, 4
    %v246 = vadd.f32 %v244, %v245
    %v247 = vrot.slane %v246, 2
    %v248 = vadd.f32 %v246, %v247
    %v249 = vrot.slane %v248, 1
    %v250 = vadd.f32 %v248, %v249
    %251 = vst.msk [vmem:[#allocation2] sm:$0x1] %vm160, %v250
    %s252 = scalar_lea.vmem %s25, 4
    %vm253 = vcmask 254977
    %254 = vst.msk [vmem:[%s252 + $0x2] sm:$0x2] %vm253, %v158
    %s255 = scalar_lea.vmem %s26, 4
    %256 = vst.msk [vmem:[%s255 + $0x2] sm:$0x2] %vm253, %v163
    %v257 = vld [vmem:[%s252] sm:$0xf]
    %v258 = vld [vmem:[%s255] sm:$0xf]
    %s259 = scalar_lea.vmem %s1, 4
    %v260 = vld [vmem:[%s259] sm:$0xf]
    %v261 = vperm.slane %v145, 1
    %v262 = vmul.f32 %v261, %v257
    %v264 = vsel %vm123, %v262, 0
    %266 = vmatpush.msra.mxu0 0.0
    %267 = vmatpush.msra.mxu0 0.0
    %268 = vmatpush.msra.mxu0 0.0
    %269 = vmatpush.msra.mxu0 0.0
    %270 = vmatpush.msra.mxu0 0.0
    %271 = vmatpush.msra.mxu0 0.0
    %272 = vmatpush.msra.mxu0 0.0
    %273 = vmatpush.msra.mxu0 0.0
    %274 = vmatpush.msra.mxu0 0.0
    %275 = vmatpush.msra.mxu0 0.0
    %276 = vmatpush.msra.mxu0 0.0
    %277 = vmatpush.msra.mxu0 0.0
    %278 = vmatpush.msra.mxu0 %v86
    %279 = vmatpush.msra.mxu0 %v85
    %280 = vmatpush.msra.mxu0 %v84
    %281 = vmatpush.msra.mxu0 %v83
    %282 = vmatmul.f32.gmra.mxu0 %v264
    %v283 = vpop.f32.mrf.mxu0
    %v284 = vadd.f32 %v260, %v283
    %285 = vdwg.mxu0
    %v286 = vsel %vm194, %v284, -inf
    %v287 = vrot.slane %v286, 4
    %v288 = vmax.f32 %v286, %v287
    %v289 = vrot.slane %v288, 2
    %v290 = vmax.f32 %v288, %v289
    %v291 = vrot.slane %v290, 1
    %v292 = vmax.f32 %v290, %v291
    %v293 = vsub.f32 %v284, %v292
    %v294 = vmul.f32 %v293, 1.442695
    %v295 = vpow.pop %v294
    %v296 = vsel %vm194, %v295, 0.0
    %v297 = vrot.slane %v296, 4
    %v298 = vadd.f32 %v296, %v297
    %v299 = vrot.slane %v298, 2
    %v300 = vadd.f32 %v298, %v299
    %v301 = vrot.slane %v300, 1
    %v302 = vadd.f32 %v300, %v301
    %v303 = vrcp.pop %v302
    %v304 = vmul.f32 %v295, %v303
    %v306 = vsel %vm214, %v304, 0
    %308 = vmatpush.msra.mxu0 0.0
    %309 = vmatpush.msra.mxu0 0.0
    %310 = vmatpush.msra.mxu0 0.0
    %311 = vmatpush.msra.mxu0 0.0
    %312 = vmatpush.msra.mxu0 0.0
    %313 = vmatpush.msra.mxu0 0.0
    %314 = vmatpush.msra.mxu0 0.0
    %315 = vmatpush.msra.mxu0 0.0
    %316 = vmatpush.msra.mxu0 0.0
    %317 = vmatpush.msra.mxu0 0.0
    %318 = vmatpush.msra.mxu0 0.0
    %319 = vmatpush.msra.mxu0 0.0
    %320 = vmatpush.msra.mxu0 0.0
    %321 = vmatpush.msra.mxu0 0.0
    %322 = vmatpush.msra.mxu0 0.0
    %323 = vmatpush.msra.mxu0 %v220
    %324 = vmatmul.f32.gmra.mxu0 %v306
    %v325 = vpop.f32.mrf.mxu0
    %v326 = vadd.f32 0.0, %v325
    %327 = vdwg.mxu0
    %v328 = vmul.f32 %v326, %v258
    %v329 = vsel %vm243, %v328, 0.0
    %v330 = vrot.slane %v329, 4
    %v331 = vadd.f32 %v329, %v330
    %v332 = vrot.slane %v331, 2
    %v333 = vadd.f32 %v331, %v332
    %v334 = vrot.slane %v333, 1
    %v335 = vadd.f32 %v333, %v334
    %336 = vst.msk [vmem:[#allocation2 + $0x1] sm:$0x1] %vm160, %v335
    %v337 = vld [vmem:[#allocation2] sm:$0x3]
    %v338 = vld [vmem:[%s17] sm:$0xff]
    %v339 = vld [vmem:[%s17 + $0x8] sm:$0xff]
    %v340 = vld [vmem:[%s17 + $0x10] sm:$0xff]
    %v341 = vld [vmem:[%s17 + $0x18] sm:$0xff]
    %v343 = vsel %vm123, %v337, 0
    %345 = vmatpush.msra.mxu0 0.0
    %346 = vmatpush.msra.mxu0 0.0
    %347 = vmatpush.msra.mxu0 0.0
    %348 = vmatpush.msra.mxu0 0.0
    %349 = vmatpush.msra.mxu0 0.0
    %350 = vmatpush.msra.mxu0 0.0
    %351 = vmatpush.msra.mxu0 0.0
    %352 = vmatpush.msra.mxu0 0.0
    %353 = vmatpush.msra.mxu0 0.0
    %354 = vmatpush.msra.mxu0 0.0
    %355 = vmatpush.msra.mxu0 0.0
    %356 = vmatpush.msra.mxu0 0.0
    %357 = vmatpush.msra.mxu0 %v341
    %358 = vmatpush.msra.mxu0 %v340
    %359 = vmatpush.msra.mxu0 %v339
    %360 = vmatpush.msra.mxu0 %v338
    %361 = vmatmul.f32.gmra.mxu0 %v343
    %v362 = vpop.f32.mrf.mxu0
    %v363 = vadd.f32 0.0, %v362
    %364 = vdwg.mxu0
    %v365 = vadd.f32 %v88, %v363
    %v366 = vld [vmem:[%s14] sm:$0x1]
    %v367 = vmul.f32 %v365, %v365
    %v368 = vsel %vm91, %v367, 0.0
    %369 = vadd.xlane.f32.xlu0 %v368
    %v370 = vpop.xlane.xlu0 %369
    %v371 = vmul.f32 %v370, %v101
    %v372 = vadd.f32 %v371, 1e-06
    %v373 = vrsqrt.pop %v372
    %v374 = vmul.f32 %v373, %v372
    %v375 = vmul.f32 %v374, %v373
    %v376 = vmul.f32 0.5, %v375
    %v377 = vsub.f32 1.5, %v376
    %v378 = vmul.f32 %v373, %v377
    %vm379 = vweird.f32 %v372
    %vm380 = vweird.f32 %v373
    %vm381 = vmor %vm379, %vm380
    %v382 = vsel %vm381, %v373, %v378
    %v383 = vmul.f32 %v365, %v382
    %v385 = vperm.slane %v366, 0
    %v387 = vmul.f32 %v383, %v385
    %v388 = vld [vmem:[%s18] sm:$0xff]
    %v389 = vld [vmem:[%s18 + $0x8] sm:$0xff]
    %v390 = vld [vmem:[%s18 + $0x10] sm:$0xff]
    %v391 = vld [vmem:[%s18 + $0x18] sm:$0xff]
    %v393 = vsel %vm123, %v387, 0
    %395 = vmatpush.msra.mxu0 0.0
    %396 = vmatpush.msra.mxu0 0.0
    %397 = vmatpush.msra.mxu0 0.0
    %398 = vmatpush.msra.mxu0 0.0
    %399 = vmatpush.msra.mxu0 0.0
    %400 = vmatpush.msra.mxu0 0.0
    %401 = vmatpush.msra.mxu0 0.0
    %402 = vmatpush.msra.mxu0 0.0
    %403 = vmatpush.msra.mxu0 0.0
    %404 = vmatpush.msra.mxu0 0.0
    %405 = vmatpush.msra.mxu0 0.0
    %406 = vmatpush.msra.mxu0 0.0
    %407 = vmatpush.msra.mxu0 %v391
    %408 = vmatpush.msra.mxu0 %v390
    %409 = vmatpush.msra.mxu0 %v389
    %410 = vmatpush.msra.mxu0 %v388
    %411 = vmatmul.f32.gmra.mxu0 %v393
    %v412 = vpop.f32.mrf.mxu0
    %v413 = vadd.f32 0.0, %v412
    %414 = vdwg.mxu0
    %v415 = vld [vmem:[%s7] sm:$0xff]
    %v416 = vld [vmem:[%s8] sm:$0xff]
    %v417 = vld [vmem:[%s2] sm:$0xff]
    %v418 = vperm.slane %v413, 0
    %v419 = vmul.f32 %v418, %v415
    %v421 = vsel %vm123, %v419, 0
    %423 = vmatpush.msra.mxu0 0.0
    %424 = vmatpush.msra.mxu0 0.0
    %425 = vmatpush.msra.mxu0 0.0
    %426 = vmatpush.msra.mxu0 0.0
    %427 = vmatpush.msra.mxu0 0.0
    %428 = vmatpush.msra.mxu0 0.0
    %429 = vmatpush.msra.mxu0 0.0
    %430 = vmatpush.msra.mxu0 0.0
    %431 = vmatpush.msra.mxu0 0.0
    %432 = vmatpush.msra.mxu0 0.0
    %433 = vmatpush.msra.mxu0 0.0
    %434 = vmatpush.msra.mxu0 0.0
    %435 = vmatpush.msra.mxu0 %v86
    %436 = vmatpush.msra.mxu0 %v85
    %437 = vmatpush.msra.mxu0 %v84
    %438 = vmatpush.msra.mxu0 %v83
    %439 = vmatmul.f32.gmra.mxu0 %v421
    %v440 = vpop.f32.mrf.mxu0
    %v441 = vadd.f32 %v417, %v440
    %442 = vdwg.mxu0
    %v443 = vsel %vm214, %v441, -inf
    %v444 = vrot.slane %v443, 4
    %v445 = vmax.f32 %v443, %v444
    %v446 = vrot.slane %v445, 2
    %v447 = vmax.f32 %v445, %v446
    %v448 = vrot.slane %v447, 1
    %v449 = vmax.f32 %v447, %v448
    %v450 = vsub.f32 %v441, %v449
    %v451 = vmul.f32 %v450, 1.442695
    %v452 = vpow.pop %v451
    %v453 = vsel %vm214, %v452, 0.0
    %v454 = vrot.slane %v453, 4
    %v455 = vadd.f32 %v453, %v454
    %v456 = vrot.slane %v455, 2
    %v457 = vadd.f32 %v455, %v456
    %v458 = vrot.slane %v457, 1
    %v459 = vadd.f32 %v457, %v458
    %v460 = vrcp.pop %v459
    %v461 = vmul.f32 %v452, %v460
    %v463 = vsel %vm214, %v461, 0
    %465 = vmatpush.msra.mxu0 0.0
    %466 = vmatpush.msra.mxu0 0.0
    %467 = vmatpush.msra.mxu0 0.0
    %468 = vmatpush.msra.mxu0 0.0
    %469 = vmatpush.msra.mxu0 0.0
    %470 = vmatpush.msra.mxu0 0.0
    %471 = vmatpush.msra.mxu0 0.0
    %472 = vmatpush.msra.mxu0 0.0
    %473 = vmatpush.msra.mxu0 0.0
    %474 = vmatpush.msra.mxu0 0.0
    %475 = vmatpush.msra.mxu0 0.0
    %476 = vmatpush.msra.mxu0 0.0
    %477 = vmatpush.msra.mxu0 0.0
    %478 = vmatpush.msra.mxu0 0.0
    %479 = vmatpush.msra.mxu0 0.0
    %480 = vmatpush.msra.mxu0 %v220
    %481 = vmatmul.f32.gmra.mxu0 %v463
    %v482 = vpop.f32.mrf.mxu0
    %v483 = vadd.f32 0.0, %v482
    %484 = vdwg.mxu0
    %v485 = vmul.f32 %v483, %v416
    %v486 = vsel %vm123, %v485, 0.0
    %v487 = vrot.slane %v486, 4
    %v488 = vadd.f32 %v486, %v487
    %v489 = vrot.slane %v488, 2
    %v490 = vadd.f32 %v488, %v489
    %v491 = vrot.slane %v490, 1
    %v492 = vadd.f32 %v490, %v491
    %493 = vst.msk [vmem:[#allocation2] sm:$0x1] %vm160, %v492
    %s494 = scalar_lea.vmem %s7, 8
    %v495 = vld [vmem:[%s494] sm:$0xff]
    %s496 = scalar_lea.vmem %s8, 8
    %v497 = vld [vmem:[%s496] sm:$0xff]
    %s498 = scalar_lea.vmem %s2, 8
    %v499 = vld [vmem:[%s498] sm:$0xff]
    %v500 = vperm.slane %v413, 1
    %v501 = vmul.f32 %v500, %v495
    %v503 = vsel %vm123, %v501, 0
    %505 = vmatpush.msra.mxu0 0.0
    %506 = vmatpush.msra.mxu0 0.0
    %507 = vmatpush.msra.mxu0 0.0
    %508 = vmatpush.msra.mxu0 0.0
    %509 = vmatpush.msra.mxu0 0.0
    %510 = vmatpush.msra.mxu0 0.0
    %511 = vmatpush.msra.mxu0 0.0
    %512 = vmatpush.msra.mxu0 0.0
    %513 = vmatpush.msra.mxu0 0.0
    %514 = vmatpush.msra.mxu0 0.0
    %515 = vmatpush.msra.mxu0 0.0
    %516 = vmatpush.msra.mxu0 0.0
    %517 = vmatpush.msra.mxu0 %v86
    %518 = vmatpush.msra.mxu0 %v85
    %519 = vmatpush.msra.mxu0 %v84
    %520 = vmatpush.msra.mxu0 %v83
    %521 = vmatmul.f32.gmra.mxu0 %v503
    %v522 = vpop.f32.mrf.mxu0
    %v523 = vadd.f32 %v499, %v522
    %524 = vdwg.mxu0
    %v525 = vsel %vm214, %v523, -inf
    %v526 = vrot.slane %v525, 4
    %v527 = vmax.f32 %v525, %v526
    %v528 = vrot.slane %v527, 2
    %v529 = vmax.f32 %v527, %v528
    %v530 = vrot.slane %v529, 1
    %v531 = vmax.f32 %v529, %v530
    %v532 = vsub.f32 %v523, %v531
    %v533 = vmul.f32 %v532, 1.442695
    %v534 = vpow.pop %v533
    %v535 = vsel %vm214, %v534, 0.0
    %v536 = vrot.slane %v535, 4
    %v537 = vadd.f32 %v535, %v536
    %v538 = vrot.slane %v537, 2
    %v539 = vadd.f32 %v537, %v538
    %v540 = vrot.slane %v539, 1
    %v541 = vadd.f32 %v539, %v540
    %v542 = vrcp.pop %v541
    %v543 = vmul.f32 %v534, %v542
    %v545 = vsel %vm214, %v543, 0
    %547 = vmatpush.msra.mxu0 0.0
    %548 = vmatpush.msra.mxu0 0.0
    %549 = vmatpush.msra.mxu0 0.0
    %550 = vmatpush.msra.mxu0 0.0
    %551 = vmatpush.msra.mxu0 0.0
    %552 = vmatpush.msra.mxu0 0.0
    %553 = vmatpush.msra.mxu0 0.0
    %554 = vmatpush.msra.mxu0 0.0
    %555 = vmatpush.msra.mxu0 0.0
    %556 = vmatpush.msra.mxu0 0.0
    %557 = vmatpush.msra.mxu0 0.0
    %558 = vmatpush.msra.mxu0 0.0
    %559 = vmatpush.msra.mxu0 0.0
    %560 = vmatpush.msra.mxu0 0.0
    %561 = vmatpush.msra.mxu0 0.0
    %562 = vmatpush.msra.mxu0 %v220
    %563 = vmatmul.f32.gmra.mxu0 %v545
    %v564 = vpop.f32.mrf.mxu0
    %v565 = vadd.f32 0.0, %v564
    %566 = vdwg.mxu0
    %v567 = vmul.f32 %v565, %v497
    %v568 = vsel %vm123, %v567, 0.0
    %v569 = vrot.slane %v568, 4
    %v570 = vadd.f32 %v568, %v569
    %v571 = vrot.slane %v570, 2
    %v572 = vadd.f32 %v570, %v571
    %v573 = vrot.slane %v572, 1
    %v574 = vadd.f32 %v572, %v573
    %575 = vst.msk [vmem:[#allocation2 + $0x1] sm:$0x1] %vm160, %v574
    %v576 = vld [vmem:[#allocation2] sm:$0x3]
    %v577 = vld [vmem:[%s19] sm:$0xff]
    %v578 = vld [vmem:[%s19 + $0x8] sm:$0xff]
    %v579 = vld [vmem:[%s19 + $0x10] sm:$0xff]
    %v580 = vld [vmem:[%s19 + $0x18] sm:$0xff]
    %v582 = vsel %vm123, %v576, 0
    %584 = vmatpush.msra.mxu0 0.0
    %585 = vmatpush.msra.mxu0 0.0
    %586 = vmatpush.msra.mxu0 0.0
    %587 = vmatpush.msra.mxu0 0.0
    %588 = vmatpush.msra.mxu0 0.0
    %589 = vmatpush.msra.mxu0 0.0
    %590 = vmatpush.msra.mxu0 0.0
    %591 = vmatpush.msra.mxu0 0.0
    %592 = vmatpush.msra.mxu0 0.0
    %593 = vmatpush.msra.mxu0 0.0
    %594 = vmatpush.msra.mxu0 0.0
    %595 = vmatpush.msra.mxu0 0.0
    %596 = vmatpush.msra.mxu0 %v580
    %597 = vmatpush.msra.mxu0 %v579
    %598 = vmatpush.msra.mxu0 %v578
    %599 = vmatpush.msra.mxu0 %v577
    %600 = vmatmul.f32.gmra.mxu0 %v582
    %v601 = vpop.f32.mrf.mxu0
    %v602 = vadd.f32 0.0, %v601
    %603 = vdwg.mxu0
    %v604 = vadd.f32 %v365, %v602
    %v605 = vld [vmem:[%s15] sm:$0x1]
    %v606 = vmul.f32 %v604, %v604
    %v607 = vsel %vm91, %v606, 0.0
    %608 = vadd.xlane.f32.xlu0 %v607
    %v609 = vpop.xlane.xlu0 %608
    %v610 = vmul.f32 %v609, %v101
    %v611 = vadd.f32 %v610, 1e-06
    %v612 = vrsqrt.pop %v611
    %v613 = vmul.f32 %v612, %v611
    %v614 = vmul.f32 %v613, %v612
    %v615 = vmul.f32 0.5, %v614
    %v616 = vsub.f32 1.5, %v615
    %v617 = vmul.f32 %v612, %v616
    %vm618 = vweird.f32 %v611
    %vm619 = vweird.f32 %v612
    %vm620 = vmor %vm618, %vm619
    %v621 = vsel %vm620, %v612, %v617
    %v622 = vmul.f32 %v604, %v621
    %v624 = vperm.slane %v605, 0
    %v626 = vmul.f32 %v622, %v624
    %v627 = vld [vmem:[%s20] sm:$0xff]
    %v628 = vld [vmem:[%s20 + $0x8] sm:$0xff]
    %v629 = vld [vmem:[%s20 + $0x10] sm:$0xff]
    %v630 = vld [vmem:[%s20 + $0x18] sm:$0xff]
    %v632 = vsel %vm123, %v626, 0
    %634 = vmatpush.msra.mxu0 0.0
    %635 = vmatpush.msra.mxu0 0.0
    %636 = vmatpush.msra.mxu0 0.0
    %637 = vmatpush.msra.mxu0 0.0
    %638 = vmatpush.msra.mxu0 0.0
    %639 = vmatpush.msra.mxu0 0.0
    %640 = vmatpush.msra.mxu0 0.0
    %641 = vmatpush.msra.mxu0 0.0
    %642 = vmatpush.msra.mxu0 0.0
    %643 = vmatpush.msra.mxu0 0.0
    %644 = vmatpush.msra.mxu0 0.0
    %645 = vmatpush.msra.mxu0 0.0
    %646 = vmatpush.msra.mxu0 %v630
    %647 = vmatpush.msra.mxu0 %v629
    %648 = vmatpush.msra.mxu0 %v628
    %649 = vmatpush.msra.mxu0 %v627
    %650 = vmatmul.f32.gmra.mxu0 %v632
    %v651 = vpop.f32.mrf.mxu0
    %v652 = vadd.f32 0.0, %v651
    %653 = vdwg.mxu0
    %v654 = vmax.f32 %v652, 0.0
    %v655 = vld [vmem:[%s21] sm:$0xff]
    %v656 = vld [vmem:[%s21 + $0x8] sm:$0xff]
    %v657 = vld [vmem:[%s21 + $0x10] sm:$0xff]
    %v658 = vld [vmem:[%s21 + $0x18] sm:$0xff]
    %v659 = vld [vmem:[%s21 + $0x20] sm:$0xff]
    %v660 = vld [vmem:[%s21 + $0x28] sm:$0xff]
    %v661 = vld [vmem:[%s21 + $0x30] sm:$0xff]
    %v662 = vld [vmem:[%s21 + $0x38] sm:$0xff]
    %vm663 = vcmask 523264
    %v665 = vsel %vm663, %v654, 0
    %667 = vmatpush.msra.mxu0 0.0
    %668 = vmatpush.msra.mxu0 0.0
    %669 = vmatpush.msra.mxu0 0.0
    %670 = vmatpush.msra.mxu0 0.0
    %671 = vmatpush.msra.mxu0 0.0
    %672 = vmatpush.msra.mxu0 0.0
    %673 = vmatpush.msra.mxu0 0.0
    %674 = vmatpush.msra.mxu0 0.0
    %675 = vmatpush.msra.mxu0 %v662
    %676 = vmatpush.msra.mxu0 %v661
    %677 = vmatpush.msra.mxu0 %v660
    %678 = vmatpush.msra.mxu0 %v659
    %679 = vmatpush.msra.mxu0 %v658
    %680 = vmatpush.msra.mxu0 %v657
    %681 = vmatpush.msra.mxu0 %v656
    %682 = vmatpush.msra.mxu0 %v655
    %683 = vmatmul.f32.gmra.mxu0 %v665
    %v684 = vpop.f32.mrf.mxu0
    %v685 = vadd.f32 0.0, %v684
    %686 = vdwg.mxu0
    %v687 = vadd.f32 %v604, %v685
    %s688 = scalar_lea.vmem %s13, 1
    %v689 = vld [vmem:[%s688] sm:$0x1]
    %v690 = vmul.f32 %v687, %v687
    %v691 = vsel %vm91, %v690, 0.0
    %692 = vadd.xlane.f32.xlu0 %v691
    %v693 = vpop.xlane.xlu0 %692
    %v694 = vmul.f32 %v693, %v101
    %v695 = vadd.f32 %v694, 1e-06
    %v696 = vrsqrt.pop %v695
    %v697 = vmul.f32 %v696, %v695
    %v698 = vmul.f32 %v697, %v696
    %v699 = vmul.f32 0.5, %v698
    %v700 = vsub.f32 1.5, %v699
    %v701 = vmul.f32 %v696, %v700
    %vm702 = vweird.f32 %v695
    %vm703 = vweird.f32 %v696
    %vm704 = vmor %vm702, %vm703
    %v705 = vsel %vm704, %v696, %v701
    %v706 = vmul.f32 %v687, %v705
    %v708 = vperm.slane %v689, 0
    %v710 = vmul.f32 %v706, %v708
    %s711 = scalar_lea.vmem %s16, 32
    %v712 = vld [vmem:[%s711] sm:$0xff]
    %v713 = vld [vmem:[%s711 + $0x8] sm:$0xff]
    %v714 = vld [vmem:[%s711 + $0x10] sm:$0xff]
    %v715 = vld [vmem:[%s711 + $0x18] sm:$0xff]
    %v717 = vsel %vm123, %v710, 0
    %719 = vmatpush.msra.mxu0 0.0
    %720 = vmatpush.msra.mxu0 0.0
    %721 = vmatpush.msra.mxu0 0.0
    %722 = vmatpush.msra.mxu0 0.0
    %723 = vmatpush.msra.mxu0 0.0
    %724 = vmatpush.msra.mxu0 0.0
    %725 = vmatpush.msra.mxu0 0.0
    %726 = vmatpush.msra.mxu0 0.0
    %727 = vmatpush.msra.mxu0 0.0
    %728 = vmatpush.msra.mxu0 0.0
    %729 = vmatpush.msra.mxu0 0.0
    %730 = vmatpush.msra.mxu0 0.0
    %731 = vmatpush.msra.mxu0 %v715
    %732 = vmatpush.msra.mxu0 %v714
    %733 = vmatpush.msra.mxu0 %v713
    %734 = vmatpush.msra.mxu0 %v712
    %735 = vmatmul.f32.gmra.mxu0 %v717
    %v736 = vpop.f32.mrf.mxu0
    %v737 = vadd.f32 0.0, %v736
    %738 = vdwg.mxu0
    %v739 = vld [vmem:[%s9] sm:$0x7]
    %v740 = vld [vmem:[%s9 + $0x4] sm:$0x7]
    %741 = vst.msk [vmem:[%s27] sm:$0x7] %vm149, %v739
    %742 = vst.msk [vmem:[%s27 + $0x4] sm:$0x7] %vm149, %v740
    %v743 = vld [vmem:[%s10] sm:$0x7]
    %v744 = vld [vmem:[%s10 + $0x4] sm:$0x7]
    %745 = vst.msk [vmem:[%s28] sm:$0x7] %vm149, %v743
    %746 = vst.msk [vmem:[%s28 + $0x4] sm:$0x7] %vm149, %v744
    %748 = vrot.lane.b32.xlu0 %v737, 96
    %v749 = vpop.permute.xlu0 %748
    %751 = vst.msk [vmem:[%s27 + $0x3] sm:$0x1] %vm160, %v749
    %752 = vrot.lane.b32.xlu0 %v737, 64
    %v753 = vpop.permute.xlu0 %752
    %755 = vst.msk [vmem:[%s28 + $0x3] sm:$0x1] %vm160, %v753
    %v756 = vld [vmem:[%s27] sm:$0xf]
    %v757 = vld [vmem:[%s28] sm:$0xf]
    %v758 = vld [vmem:[%s1] sm:$0xf]
    %v759 = vperm.slane %v737, 0
    %v760 = vmul.f32 %v759, %v756
    %v762 = vsel %vm123, %v760, 0
    %764 = vmatpush.msra.mxu0 0.0
    %765 = vmatpush.msra.mxu0 0.0
    %766 = vmatpush.msra.mxu0 0.0
    %767 = vmatpush.msra.mxu0 0.0
    %768 = vmatpush.msra.mxu0 0.0
    %769 = vmatpush.msra.mxu0 0.0
    %770 = vmatpush.msra.mxu0 0.0
    %771 = vmatpush.msra.mxu0 0.0
    %772 = vmatpush.msra.mxu0 0.0
    %773 = vmatpush.msra.mxu0 0.0
    %774 = vmatpush.msra.mxu0 0.0
    %775 = vmatpush.msra.mxu0 0.0
    %776 = vmatpush.msra.mxu0 %v86
    %777 = vmatpush.msra.mxu0 %v85
    %778 = vmatpush.msra.mxu0 %v84
    %779 = vmatpush.msra.mxu0 %v83
    %780 = vmatmul.f32.gmra.mxu0 %v762
    %v781 = vpop.f32.mrf.mxu0
    %v782 = vadd.f32 %v758, %v781
    %783 = vdwg.mxu0
    %v784 = vsel %vm194, %v782, -inf
    %v785 = vrot.slane %v784, 4
    %v786 = vmax.f32 %v784, %v785
    %v787 = vrot.slane %v786, 2
    %v788 = vmax.f32 %v786, %v787
    %v789 = vrot.slane %v788, 1
    %v790 = vmax.f32 %v788, %v789
    %v791 = vsub.f32 %v782, %v790
    %v792 = vmul.f32 %v791, 1.442695
    %v793 = vpow.pop %v792
    %v794 = vsel %vm194, %v793, 0.0
    %v795 = vrot.slane %v794, 4
    %v796 = vadd.f32 %v794, %v795
    %v797 = vrot.slane %v796, 2
    %v798 = vadd.f32 %v796, %v797
    %v799 = vrot.slane %v798, 1
    %v800 = vadd.f32 %v798, %v799
    %v801 = vrcp.pop %v800
    %v802 = vmul.f32 %v793, %v801
    %v804 = vsel %vm214, %v802, 0
    %806 = vmatpush.msra.mxu0 0.0
    %807 = vmatpush.msra.mxu0 0.0
    %808 = vmatpush.msra.mxu0 0.0
    %809 = vmatpush.msra.mxu0 0.0
    %810 = vmatpush.msra.mxu0 0.0
    %811 = vmatpush.msra.mxu0 0.0
    %812 = vmatpush.msra.mxu0 0.0
    %813 = vmatpush.msra.mxu0 0.0
    %814 = vmatpush.msra.mxu0 0.0
    %815 = vmatpush.msra.mxu0 0.0
    %816 = vmatpush.msra.mxu0 0.0
    %817 = vmatpush.msra.mxu0 0.0
    %818 = vmatpush.msra.mxu0 0.0
    %819 = vmatpush.msra.mxu0 0.0
    %820 = vmatpush.msra.mxu0 0.0
    %821 = vmatpush.msra.mxu0 %v220
    %822 = vmatmul.f32.gmra.mxu0 %v804
    %v823 = vpop.f32.mrf.mxu0
    %v824 = vadd.f32 0.0, %v823
    %825 = vdwg.mxu0
    %v826 = vmul.f32 %v824, %v757
    %v827 = vsel %vm243, %v826, 0.0
    %v828 = vrot.slane %v827, 4
    %v829 = vadd.f32 %v827, %v828
    %v830 = vrot.slane %v829, 2
    %v831 = vadd.f32 %v829, %v830
    %v832 = vrot.slane %v831, 1
    %v833 = vadd.f32 %v831, %v832
    %834 = vst.msk [vmem:[#allocation2] sm:$0x1] %vm160, %v833
    %s835 = scalar_lea.vmem %s27, 4
    %836 = vst.msk [vmem:[%s835 + $0x2] sm:$0x2] %vm253, %v749
    %s837 = scalar_lea.vmem %s28, 4
    %838 = vst.msk [vmem:[%s837 + $0x2] sm:$0x2] %vm253, %v753
    %v839 = vld [vmem:[%s835] sm:$0xf]
    %v840 = vld [vmem:[%s837] sm:$0xf]
    %v841 = vld [vmem:[%s259] sm:$0xf]
    %v842 = vperm.slane %v737, 1
    %v843 = vmul.f32 %v842, %v839
    %v845 = vsel %vm123, %v843, 0
    %847 = vmatpush.msra.mxu0 0.0
    %848 = vmatpush.msra.mxu0 0.0
    %849 = vmatpush.msra.mxu0 0.0
    %850 = vmatpush.msra.mxu0 0.0
    %851 = vmatpush.msra.mxu0 0.0
    %852 = vmatpush.msra.mxu0 0.0
    %853 = vmatpush.msra.mxu0 0.0
    %854 = vmatpush.msra.mxu0 0.0
    %855 = vmatpush.msra.mxu0 0.0
    %856 = vmatpush.msra.mxu0 0.0
    %857 = vmatpush.msra.mxu0 0.0
    %858 = vmatpush.msra.mxu0 0.0
    %859 = vmatpush.msra.mxu0 %v86
    %860 = vmatpush.msra.mxu0 %v85
    %861 = vmatpush.msra.mxu0 %v84
    %862 = vmatpush.msra.mxu0 %v83
    %863 = vmatmul.f32.gmra.mxu0 %v845
    %v864 = vpop.f32.mrf.mxu0
    %v865 = vadd.f32 %v841, %v864
    %866 = vdwg.mxu0
    %v867 = vsel %vm194, %v865, -inf
    %v868 = vrot.slane %v867, 4
    %v869 = vmax.f32 %v867, %v868
    %v870 = vrot.slane %v869, 2
    %v871 = vmax.f32 %v869, %v870
    %v872 = vrot.slane %v871, 1
    %v873 = vmax.f32 %v871, %v872
    %v874 = vsub.f32 %v865, %v873
    %v875 = vmul.f32 %v874, 1.442695
    %v876 = vpow.pop %v875
    %v877 = vsel %vm194, %v876, 0.0
    %v878 = vrot.slane %v877, 4
    %v879 = vadd.f32 %v877, %v878
    %v880 = vrot.slane %v879, 2
    %v881 = vadd.f32 %v879, %v880
    %v882 = vrot.slane %v881, 1
    %v883 = vadd.f32 %v881, %v882
    %v884 = vrcp.pop %v883
    %v885 = vmul.f32 %v876, %v884
    %v887 = vsel %vm214, %v885, 0
    %889 = vmatpush.msra.mxu0 0.0
    %890 = vmatpush.msra.mxu0 0.0
    %891 = vmatpush.msra.mxu0 0.0
    %892 = vmatpush.msra.mxu0 0.0
    %893 = vmatpush.msra.mxu0 0.0
    %894 = vmatpush.msra.mxu0 0.0
    %895 = vmatpush.msra.mxu0 0.0
    %896 = vmatpush.msra.mxu0 0.0
    %897 = vmatpush.msra.mxu0 0.0
    %898 = vmatpush.msra.mxu0 0.0
    %899 = vmatpush.msra.mxu0 0.0
    %900 = vmatpush.msra.mxu0 0.0
    %901 = vmatpush.msra.mxu0 0.0
    %902 = vmatpush.msra.mxu0 0.0
    %903 = vmatpush.msra.mxu0 0.0
    %904 = vmatpush.msra.mxu0 %v220
    %905 = vmatmul.f32.gmra.mxu0 %v887
    %v906 = vpop.f32.mrf.mxu0
    %v907 = vadd.f32 0.0, %v906
    %908 = vdwg.mxu0
    %v909 = vmul.f32 %v907, %v840
    %v910 = vsel %vm243, %v909, 0.0
    %v911 = vrot.slane %v910, 4
    %v912 = vadd.f32 %v910, %v911
    %v913 = vrot.slane %v912, 2
    %v914 = vadd.f32 %v912, %v913
    %v915 = vrot.slane %v914, 1
    %v916 = vadd.f32 %v914, %v915
    %917 = vst.msk [vmem:[#allocation2 + $0x1] sm:$0x1] %vm160, %v916
    %v918 = vld [vmem:[#allocation2] sm:$0x3]
    %s919 = scalar_lea.vmem %s17, 32
    %v920 = vld [vmem:[%s919] sm:$0xff]
    %v921 = vld [vmem:[%s919 + $0x8] sm:$0xff]
    %v922 = vld [vmem:[%s919 + $0x10] sm:$0xff]
    %v923 = vld [vmem:[%s919 + $0x18] sm:$0xff]
    %v925 = vsel %vm123, %v918, 0
    %927 = vmatpush.msra.mxu0 0.0
    %928 = vmatpush.msra.mxu0 0.0
    %929 = vmatpush.msra.mxu0 0.0
    %930 = vmatpush.msra.mxu0 0.0
    %931 = vmatpush.msra.mxu0 0.0
    %932 = vmatpush.msra.mxu0 0.0
    %933 = vmatpush.msra.mxu0 0.0
    %934 = vmatpush.msra.mxu0 0.0
    %935 = vmatpush.msra.mxu0 0.0
    %936 = vmatpush.msra.mxu0 0.0
    %937 = vmatpush.msra.mxu0 0.0
    %938 = vmatpush.msra.mxu0 0.0
    %939 = vmatpush.msra.mxu0 %v923
    %940 = vmatpush.msra.mxu0 %v922
    %941 = vmatpush.msra.mxu0 %v921
    %942 = vmatpush.msra.mxu0 %v920
    %943 = vmatmul.f32.gmra.mxu0 %v925
    %v944 = vpop.f32.mrf.mxu0
    %v945 = vadd.f32 0.0, %v944
    %946 = vdwg.mxu0
    %v947 = vadd.f32 %v687, %v945
    %s948 = scalar_lea.vmem %s14, 1
    %v949 = vld [vmem:[%s948] sm:$0x1]
    %v950 = vmul.f32 %v947, %v947
    %v951 = vsel %vm91, %v950, 0.0
    %952 = vadd.xlane.f32.xlu0 %v951
    %v953 = vpop.xlane.xlu0 %952
    %v954 = vmul.f32 %v953, %v101
    %v955 = vadd.f32 %v954, 1e-06
    %v956 = vrsqrt.pop %v955
    %v957 = vmul.f32 %v956, %v955
    %v958 = vmul.f32 %v957, %v956
    %v959 = vmul.f32 0.5, %v958
    %v960 = vsub.f32 1.5, %v959
    %v961 = vmul.f32 %v956, %v960
    %vm962 = vweird.f32 %v955
    %vm963 = vweird.f32 %v956
    %vm964 = vmor %vm962, %vm963
    %v965 = vsel %vm964, %v956, %v961
    %v966 = vmul.f32 %v947, %v965
    %v968 = vperm.slane %v949, 0
    %v970 = vmul.f32 %v966, %v968
    %s971 = scalar_lea.vmem %s18, 32
    %v972 = vld [vmem:[%s971] sm:$0xff]
    %v973 = vld [vmem:[%s971 + $0x8] sm:$0xff]
    %v974 = vld [vmem:[%s971 + $0x10] sm:$0xff]
    %v975 = vld [vmem:[%s971 + $0x18] sm:$0xff]
    %v977 = vsel %vm123, %v970, 0
    %979 = vmatpush.msra.mxu0 0.0
    %980 = vmatpush.msra.mxu0 0.0
    %981 = vmatpush.msra.mxu0 0.0
    %982 = vmatpush.msra.mxu0 0.0
    %983 = vmatpush.msra.mxu0 0.0
    %984 = vmatpush.msra.mxu0 0.0
    %985 = vmatpush.msra.mxu0 0.0
    %986 = vmatpush.msra.mxu0 0.0
    %987 = vmatpush.msra.mxu0 0.0
    %988 = vmatpush.msra.mxu0 0.0
    %989 = vmatpush.msra.mxu0 0.0
    %990 = vmatpush.msra.mxu0 0.0
    %991 = vmatpush.msra.mxu0 %v975
    %992 = vmatpush.msra.mxu0 %v974
    %993 = vmatpush.msra.mxu0 %v973
    %994 = vmatpush.msra.mxu0 %v972
    %995 = vmatmul.f32.gmra.mxu0 %v977
    %v996 = vpop.f32.mrf.mxu0
    %v997 = vadd.f32 0.0, %v996
    %998 = vdwg.mxu0
    %v999 = vld [vmem:[%s11] sm:$0xff]
    %v1000 = vld [vmem:[%s12] sm:$0xff]
    %v1001 = vld [vmem:[%s2] sm:$0xff]
    %v1002 = vperm.slane %v997, 0
    %v1003 = vmul.f32 %v1002, %v999
    %v1005 = vsel %vm123, %v1003, 0
    %1007 = vmatpush.msra.mxu0 0.0
    %1008 = vmatpush.msra.mxu0 0.0
    %1009 = vmatpush.msra.mxu0 0.0
    %1010 = vmatpush.msra.mxu0 0.0
    %1011 = vmatpush.msra.mxu0 0.0
    %1012 = vmatpush.msra.mxu0 0.0
    %1013 = vmatpush.msra.mxu0 0.0
    %1014 = vmatpush.msra.mxu0 0.0
    %1015 = vmatpush.msra.mxu0 0.0
    %1016 = vmatpush.msra.mxu0 0.0
    %1017 = vmatpush.msra.mxu0 0.0
    %1018 = vmatpush.msra.mxu0 0.0
    %1019 = vmatpush.msra.mxu0 %v86
    %1020 = vmatpush.msra.mxu0 %v85
    %1021 = vmatpush.msra.mxu0 %v84
    %1022 = vmatpush.msra.mxu0 %v83
    %1023 = vmatmul.f32.gmra.mxu0 %v1005
    %v1024 = vpop.f32.mrf.mxu0
    %v1025 = vadd.f32 %v1001, %v1024
    %1026 = vdwg.mxu0
    %v1027 = vsel %vm214, %v1025, -inf
    %v1028 = vrot.slane %v1027, 4
    %v1029 = vmax.f32 %v1027, %v1028
    %v1030 = vrot.slane %v1029, 2
    %v1031 = vmax.f32 %v1029, %v1030
    %v1032 = vrot.slane %v1031, 1
    %v1033 = vmax.f32 %v1031, %v1032
    %v1034 = vsub.f32 %v1025, %v1033
    %v1035 = vmul.f32 %v1034, 1.442695
    %v1036 = vpow.pop %v1035
    %v1037 = vsel %vm214, %v1036, 0.0
    %v1038 = vrot.slane %v1037, 4
    %v1039 = vadd.f32 %v1037, %v1038
    %v1040 = vrot.slane %v1039, 2
    %v1041 = vadd.f32 %v1039, %v1040
    %v1042 = vrot.slane %v1041, 1
    %v1043 = vadd.f32 %v1041, %v1042
    %v1044 = vrcp.pop %v1043
    %v1045 = vmul.f32 %v1036, %v1044
    %v1047 = vsel %vm214, %v1045, 0
    %1049 = vmatpush.msra.mxu0 0.0
    %1050 = vmatpush.msra.mxu0 0.0
    %1051 = vmatpush.msra.mxu0 0.0
    %1052 = vmatpush.msra.mxu0 0.0
    %1053 = vmatpush.msra.mxu0 0.0
    %1054 = vmatpush.msra.mxu0 0.0
    %1055 = vmatpush.msra.mxu0 0.0
    %1056 = vmatpush.msra.mxu0 0.0
    %1057 = vmatpush.msra.mxu0 0.0
    %1058 = vmatpush.msra.mxu0 0.0
    %1059 = vmatpush.msra.mxu0 0.0
    %1060 = vmatpush.msra.mxu0 0.0
    %1061 = vmatpush.msra.mxu0 0.0
    %1062 = vmatpush.msra.mxu0 0.0
    %1063 = vmatpush.msra.mxu0 0.0
    %1064 = vmatpush.msra.mxu0 %v220
    %1065 = vmatmul.f32.gmra.mxu0 %v1047
    %v1066 = vpop.f32.mrf.mxu0
    %v1067 = vadd.f32 0.0, %v1066
    %1068 = vdwg.mxu0
    %v1069 = vmul.f32 %v1067, %v1000
    %v1070 = vsel %vm123, %v1069, 0.0
    %v1071 = vrot.slane %v1070, 4
    %v1072 = vadd.f32 %v1070, %v1071
    %v1073 = vrot.slane %v1072, 2
    %v1074 = vadd.f32 %v1072, %v1073
    %v1075 = vrot.slane %v1074, 1
    %v1076 = vadd.f32 %v1074, %v1075
    %1077 = vst.msk [vmem:[#allocation2] sm:$0x1] %vm160, %v1076
    %s1078 = scalar_lea.vmem %s11, 8
    %v1079 = vld [vmem:[%s1078] sm:$0xff]
    %s1080 = scalar_lea.vmem %s12, 8
    %v1081 = vld [vmem:[%s1080] sm:$0xff]
    %v1082 = vld [vmem:[%s498] sm:$0xff]
    %v1083 = vperm.slane %v997, 1
    %v1084 = vmul.f32 %v1083, %v1079
    %v1086 = vsel %vm123, %v1084, 0
    %1088 = vmatpush.msra.mxu0 0.0
    %1089 = vmatpush.msra.mxu0 0.0
    %1090 = vmatpush.msra.mxu0 0.0
    %1091 = vmatpush.msra.mxu0 0.0
    %1092 = vmatpush.msra.mxu0 0.0
    %1093 = vmatpush.msra.mxu0 0.0
    %1094 = vmatpush.msra.mxu0 0.0
    %1095 = vmatpush.msra.mxu0 0.0
    %1096 = vmatpush.msra.mxu0 0.0
    %1097 = vmatpush.msra.mxu0 0.0
    %1098 = vmatpush.msra.mxu0 0.0
    %1099 = vmatpush.msra.mxu0 0.0
    %1100 = vmatpush.msra.mxu0 %v86
    %1101 = vmatpush.msra.mxu0 %v85
    %1102 = vmatpush.msra.mxu0 %v84
    %1103 = vmatpush.msra.mxu0 %v83
    %1104 = vmatmul.f32.gmra.mxu0 %v1086
    %v1105 = vpop.f32.mrf.mxu0
    %v1106 = vadd.f32 %v1082, %v1105
    %1107 = vdwg.mxu0
    %v1108 = vsel %vm214, %v1106, -inf
    %v1109 = vrot.slane %v1108, 4
    %v1110 = vmax.f32 %v1108, %v1109
    %v1111 = vrot.slane %v1110, 2
    %v1112 = vmax.f32 %v1110, %v1111
    %v1113 = vrot.slane %v1112, 1
    %v1114 = vmax.f32 %v1112, %v1113
    %v1115 = vsub.f32 %v1106, %v1114
    %v1116 = vmul.f32 %v1115, 1.442695
    %v1117 = vpow.pop %v1116
    %v1118 = vsel %vm214, %v1117, 0.0
    %v1119 = vrot.slane %v1118, 4
    %v1120 = vadd.f32 %v1118, %v1119
    %v1121 = vrot.slane %v1120, 2
    %v1122 = vadd.f32 %v1120, %v1121
    %v1123 = vrot.slane %v1122, 1
    %v1124 = vadd.f32 %v1122, %v1123
    %v1125 = vrcp.pop %v1124
    %v1126 = vmul.f32 %v1117, %v1125
    %v1128 = vsel %vm214, %v1126, 0
    %1130 = vmatpush.msra.mxu0 0.0
    %1131 = vmatpush.msra.mxu0 0.0
    %1132 = vmatpush.msra.mxu0 0.0
    %1133 = vmatpush.msra.mxu0 0.0
    %1134 = vmatpush.msra.mxu0 0.0
    %1135 = vmatpush.msra.mxu0 0.0
    %1136 = vmatpush.msra.mxu0 0.0
    %1137 = vmatpush.msra.mxu0 0.0
    %1138 = vmatpush.msra.mxu0 0.0
    %1139 = vmatpush.msra.mxu0 0.0
    %1140 = vmatpush.msra.mxu0 0.0
    %1141 = vmatpush.msra.mxu0 0.0
    %1142 = vmatpush.msra.mxu0 0.0
    %1143 = vmatpush.msra.mxu0 0.0
    %1144 = vmatpush.msra.mxu0 0.0
    %1145 = vmatpush.msra.mxu0 %v220
    %1146 = vmatmul.f32.gmra.mxu0 %v1128
    %v1147 = vpop.f32.mrf.mxu0
    %v1148 = vadd.f32 0.0, %v1147
    %1149 = vdwg.mxu0
    %v1150 = vmul.f32 %v1148, %v1081
    %v1151 = vsel %vm123, %v1150, 0.0
    %v1152 = vrot.slane %v1151, 4
    %v1153 = vadd.f32 %v1151, %v1152
    %v1154 = vrot.slane %v1153, 2
    %v1155 = vadd.f32 %v1153, %v1154
    %v1156 = vrot.slane %v1155, 1
    %v1157 = vadd.f32 %v1155, %v1156
    %1158 = vst.msk [vmem:[#allocation2 + $0x1] sm:$0x1] %vm160, %v1157
    %v1159 = vld [vmem:[#allocation2] sm:$0x3]
    %s1160 = scalar_lea.vmem %s19, 32
    %v1161 = vld [vmem:[%s1160] sm:$0xff]
    %v1162 = vld [vmem:[%s1160 + $0x8] sm:$0xff]
    %v1163 = vld [vmem:[%s1160 + $0x10] sm:$0xff]
    %v1164 = vld [vmem:[%s1160 + $0x18] sm:$0xff]
    %v1166 = vsel %vm123, %v1159, 0
    %1168 = vmatpush.msra.mxu0 0.0
    %1169 = vmatpush.msra.mxu0 0.0
    %1170 = vmatpush.msra.mxu0 0.0
    %1171 = vmatpush.msra.mxu0 0.0
    %1172 = vmatpush.msra.mxu0 0.0
    %1173 = vmatpush.msra.mxu0 0.0
    %1174 = vmatpush.msra.mxu0 0.0
    %1175 = vmatpush.msra.mxu0 0.0
    %1176 = vmatpush.msra.mxu0 0.0
    %1177 = vmatpush.msra.mxu0 0.0
    %1178 = vmatpush.msra.mxu0 0.0
    %1179 = vmatpush.msra.mxu0 0.0
    %1180 = vmatpush.msra.mxu0 %v1164
    %1181 = vmatpush.msra.mxu0 %v1163
    %1182 = vmatpush.msra.mxu0 %v1162
    %1183 = vmatpush.msra.mxu0 %v1161
    %1184 = vmatmul.f32.gmra.mxu0 %v1166
    %v1185 = vpop.f32.mrf.mxu0
    %v1186 = vadd.f32 0.0, %v1185
    %1187 = vdwg.mxu0
    %v1188 = vadd.f32 %v947, %v1186
    %s1189 = scalar_lea.vmem %s15, 1
    %v1190 = vld [vmem:[%s1189] sm:$0x1]
    %v1191 = vmul.f32 %v1188, %v1188
    %v1192 = vsel %vm91, %v1191, 0.0
    %1193 = vadd.xlane.f32.xlu0 %v1192
    %v1194 = vpop.xlane.xlu0 %1193
    %v1195 = vmul.f32 %v1194, %v101
    %v1196 = vadd.f32 %v1195, 1e-06
    %v1197 = vrsqrt.pop %v1196
    %v1198 = vmul.f32 %v1197, %v1196
    %v1199 = vmul.f32 %v1198, %v1197
    %v1200 = vmul.f32 0.5, %v1199
    %v1201 = vsub.f32 1.5, %v1200
    %v1202 = vmul.f32 %v1197, %v1201
    %vm1203 = vweird.f32 %v1196
    %vm1204 = vweird.f32 %v1197
    %vm1205 = vmor %vm1203, %vm1204
    %v1206 = vsel %vm1205, %v1197, %v1202
    %v1207 = vmul.f32 %v1188, %v1206
    %v1209 = vperm.slane %v1190, 0
    %v1211 = vmul.f32 %v1207, %v1209
    %s1212 = scalar_lea.vmem %s20, 32
    %v1213 = vld [vmem:[%s1212] sm:$0xff]
    %v1214 = vld [vmem:[%s1212 + $0x8] sm:$0xff]
    %v1215 = vld [vmem:[%s1212 + $0x10] sm:$0xff]
    %v1216 = vld [vmem:[%s1212 + $0x18] sm:$0xff]
    %v1218 = vsel %vm123, %v1211, 0
    %1220 = vmatpush.msra.mxu0 0.0
    %1221 = vmatpush.msra.mxu0 0.0
    %1222 = vmatpush.msra.mxu0 0.0
    %1223 = vmatpush.msra.mxu0 0.0
    %1224 = vmatpush.msra.mxu0 0.0
    %1225 = vmatpush.msra.mxu0 0.0
    %1226 = vmatpush.msra.mxu0 0.0
    %1227 = vmatpush.msra.mxu0 0.0
    %1228 = vmatpush.msra.mxu0 0.0
    %1229 = vmatpush.msra.mxu0 0.0
    %1230 = vmatpush.msra.mxu0 0.0
    %1231 = vmatpush.msra.mxu0 0.0
    %1232 = vmatpush.msra.mxu0 %v1216
    %1233 = vmatpush.msra.mxu0 %v1215
    %1234 = vmatpush.msra.mxu0 %v1214
    %1235 = vmatpush.msra.mxu0 %v1213
    %1236 = vmatmul.f32.gmra.mxu0 %v1218
    %v1237 = vpop.f32.mrf.mxu0
    %v1238 = vadd.f32 0.0, %v1237
    %1239 = vdwg.mxu0
    %v1240 = vmax.f32 %v1238, 0.0
    %s1241 = scalar_lea.vmem %s21, 64
    %v1242 = vld [vmem:[%s1241] sm:$0xff]
    %v1243 = vld [vmem:[%s1241 + $0x8] sm:$0xff]
    %v1244 = vld [vmem:[%s1241 + $0x10] sm:$0xff]
    %v1245 = vld [vmem:[%s1241 + $0x18] sm:$0xff]
    %v1246 = vld [vmem:[%s1241 + $0x20] sm:$0xff]
    %v1247 = vld [vmem:[%s1241 + $0x28] sm:$0xff]
    %v1248 = vld [vmem:[%s1241 + $0x30] sm:$0xff]
    %v1249 = vld [vmem:[%s1241 + $0x38] sm:$0xff]
    %v1251 = vsel %vm663, %v1240, 0
    %1253 = vmatpush.msra.mxu0 0.0
    %1254 = vmatpush.msra.mxu0 0.0
    %1255 = vmatpush.msra.mxu0 0.0
    %1256 = vmatpush.msra.mxu0 0.0
    %1257 = vmatpush.msra.mxu0 0.0
    %1258 = vmatpush.msra.mxu0 0.0
    %1259 = vmatpush.msra.mxu0 0.0
    %1260 = vmatpush.msra.mxu0 0.0
    %1261 = vmatpush.msra.mxu0 %v1249
    %1262 = vmatpush.msra.mxu0 %v1248
    %1263 = vmatpush.msra.mxu0 %v1247
    %1264 = vmatpush.msra.mxu0 %v1246
    %1265 = vmatpush.msra.mxu0 %v1245
    %1266 = vmatpush.msra.mxu0 %v1244
    %1267 = vmatpush.msra.mxu0 %v1243
    %1268 = vmatpush.msra.mxu0 %v1242
    %1269 = vmatmul.f32.gmra.mxu0 %v1251
    %v1270 = vpop.f32.mrf.mxu0
    %v1271 = vadd.f32 0.0, %v1270
    %1272 = vdwg.mxu0
    %v1273 = vadd.f32 %v1188, %v1271
    %v1274 = vld [vmem:[%s22] sm:$0x1]
    %v1275 = vmul.f32 %v1273, %v1273
    %v1276 = vsel %vm91, %v1275, 0.0
    %1277 = vadd.xlane.f32.xlu0 %v1276
    %v1278 = vpop.xlane.xlu0 %1277
    %v1279 = vmul.f32 %v1278, %v101
    %v1280 = vadd.f32 %v1279, 1e-06
    %v1281 = vrsqrt.pop %v1280
    %v1282 = vmul.f32 %v1281, %v1280
    %v1283 = vmul.f32 %v1282, %v1281
    %v1284 = vmul.f32 0.5, %v1283
    %v1285 = vsub.f32 1.5, %v1284
    %v1286 = vmul.f32 %v1281, %v1285
    %vm1287 = vweird.f32 %v1280
    %vm1288 = vweird.f32 %v1281
    %vm1289 = vmor %vm1287, %vm1288
    %v1290 = vsel %vm1289, %v1281, %v1286
    %v1291 = vmul.f32 %v1273, %v1290
    %v1293 = vperm.slane %v1274, 0
    %v1295 = vmul.f32 %v1291, %v1293
    %v1296 = vld [vmem:[%s23] sm:$0xff]
    %v1297 = vld [vmem:[%s23 + $0x8] sm:$0xff]
    %v1298 = vld [vmem:[%s23 + $0x10] sm:$0xff]
    %v1299 = vld [vmem:[%s23 + $0x18] sm:$0xff]
    %v1301 = vsel %vm123, %v1295, 0
    %1303 = vmatpush.msra.mxu0 0.0
    %1304 = vmatpush.msra.mxu0 0.0
    %1305 = vmatpush.msra.mxu0 0.0
    %1306 = vmatpush.msra.mxu0 0.0
    %1307 = vmatpush.msra.mxu0 0.0
    %1308 = vmatpush.msra.mxu0 0.0
    %1309 = vmatpush.msra.mxu0 0.0
    %1310 = vmatpush.msra.mxu0 0.0
    %1311 = vmatpush.msra.mxu0 0.0
    %1312 = vmatpush.msra.mxu0 0.0
    %1313 = vmatpush.msra.mxu0 0.0
    %1314 = vmatpush.msra.mxu0 0.0
    %1315 = vmatpush.msra.mxu0 %v1299
    %1316 = vmatpush.msra.mxu0 %v1298
    %1317 = vmatpush.msra.mxu0 %v1297
    %1318 = vmatpush.msra.mxu0 %v1296
    %1319 = vmatmul.f32.gmra.mxu0 %v1301
    %v1320 = vpop.f32.mrf.mxu0
    %v1321 = vadd.f32 0.0, %v1320
    %1322 = vdwg.mxu0
    %1323 = vst [vmem:[#allocation3] sm:$0x3] %v1321
    // Predicated region
    $region98: #{t5_decoder_forward.1} parent=1 // pred_check
      _
    $region99: #{t5_decoder_forward.1} parent=1 // pred_check_branch
      %1325 = sbr.rel (0) target = $region101
    $region100: #{t5_decoder_forward.1} parent=1 // pred_region
      %1327 = vsyncadd [#allocation4], 0
      %s1329 = sshll.u32 [#allocation3], 4
      %s1330 = int_to_ptr.vmem [resolvable:$true] %s1329
      %s1331 = sshll.u32 %s24, 4
      %s1332 = int_to_ptr.hbm [resolvable:$true] %s1331
      %1334 = dma.vmem_to_hbm [thread:$0]  %s1330, 32, %s1332, [#allocation4]
    $region101: #{t5_decoder_forward.1} parent=1 // pred_fallthru
      _
    // Predicated region
    $region102: #{t5_decoder_forward.1} parent=1 // pred_check
      _
    $region103: #{t5_decoder_forward.1} parent=1 // pred_check_branch
      %1336 = sbr.rel (0) target = $region105
    $region104: #{t5_decoder_forward.1} parent=1 // pred_region
      _
    $region105: #{t5_decoder_forward.1} parent=1 // pred_fallthru
      _
    // Predicated region
    $region106: #{t5_decoder_forward.1} parent=1 // pred_check
      _
    $region107: #{t5_decoder_forward.1} parent=1 // pred_check_branch
      %1338 = sbr.rel (0) target = $region109
    $region108: #{t5_decoder_forward.1} parent=1 // pred_region
      _
    $region109: #{t5_decoder_forward.1} parent=1 // pred_fallthru
      _
    // Predicated region
    $region110: #{t5_decoder_forward.1} parent=1 // pred_check
      _
    $region111: #{t5_decoder_forward.1} parent=1 // pred_check_branch
      %1340 = sbr.rel (0) target = $region113
    $region112: #{t5_decoder_forward.1} parent=1 // pred_region
      _
    $region113: #{t5_decoder_forward.1} parent=1 // pred_fallthru
      _
    // Predicated region
    $region114: #{t5_decoder_forward.1} parent=1 // pred_check
      _
    $region115: #{t5_decoder_forward.1} parent=1 // pred_check_branch
      %1342 = sbr.rel (0) target = $region117
    $region116: #{t5_decoder_forward.1} parent=1 // pred_region
      _
    $region117: #{t5_decoder_forward.1} parent=1 // pred_fallthru
      _
    // Predicated region
    $region118: #{t5_decoder_forward.1} parent=1 // pred_check
      _
    $region119: #{t5_decoder_forward.1} parent=1 // pred_check_branch
      %1344 = sbr.rel (0) target = $region121
    $region120: #{t5_decoder_forward.1} parent=1 // pred_region
      %1346 = dma.done [#allocation4], 32
    $region121: #{t5_decoder_forward.1} parent=1 // pred_fallthru
      _
    // Predicated region
    $region122: #{t5_decoder_forward.1} parent=1 // pred_check
      _
    $region123: #{t5_decoder_forward.1} parent=1 // pred_check_branch
      %1348 = sbr.rel (0) target = $region125
    $region124: #{t5_decoder_forward.1} parent=1 // pred_region
      _
    $region125: #{t5_decoder_forward.1} parent=1 // pred_fallthru
      _
    // Predicated region
    $region126: #{t5_decoder_forward.1} parent=1 // pred_check
      _
    $region127: #{t5_decoder_forward.1} parent=1 // pred_check_branch
      %1350 = sbr.rel (0) target = $region129
    $region128: #{t5_decoder_forward.1} parent=1 // pred_region
      _
    $region129: #{t5_decoder_forward.1} parent=1 // pred_fallthru
      _
    // Predicated region
    $region130: #{t5_decoder_forward.1} parent=1 // pred_check
      _
    $region131: #{t5_decoder_forward.1} parent=1 // pred_check_branch
      %1352 = sbr.rel (0) target = $region133
    $region132: #{t5_decoder_forward.1} parent=1 // pred_region
      _
    $region133: #{t5_decoder_forward.1} parent=1 // pred_fallthru
      _
    // Predicated region
    $region134: #{t5_decoder_forward.1} parent=1 // pred_check
      _
    $region135: #{t5_decoder_forward.1} parent=1 // pred_check_branch
      %1354 = sbr.rel (0) target = $region137
    $region136: #{t5_decoder_forward.1} parent=1 // pred_region
      _
    $region137: #{t5_decoder_forward.1} parent=1 // pred_fallthru
      _
    %1355 = vsyncpa [#allocation4], 1

</llo_original>
